<compile_context>
chip_gen: v7x
topology: tpu7x:2x2x1
jax: 0.10.0
libtpu: 0.0.40
codegen_flags: <defaults>
</compile_context>

<pallas_src>
import functools
import math

import jax
import jax.numpy as jnp
from jax.experimental import pallas as pl
from jax.experimental.pallas import tpu as pltpu

# Large finite negative (avoids -inf - -inf NaNs if reused beyond causal prefill).
DEFAULT_MASK_VALUE = -0.7 * float(jnp.finfo(jnp.float32).max)


# ---------------------------------------------------------------------------
# Tiled linear kernels (f32 accumulation, streamed K axis).
# ---------------------------------------------------------------------------
def _linear_bias_kernel(x_ref, w_ref, b_ref, o_ref, acc_ref):
    k = pl.program_id(2)

    @pl.when(k == 0)
    def _():
        acc_ref[...] = jnp.zeros_like(acc_ref)

    acc_ref[...] += jnp.dot(x_ref[...], w_ref[...],
                            preferred_element_type=jnp.float32)

    @pl.when(k == pl.num_programs(2) - 1)
    def _():
        o_ref[...] = (acc_ref[...] + b_ref[...].astype(jnp.float32)).astype(o_ref.dtype)


def _linear_nobias_kernel(x_ref, w_ref, o_ref, acc_ref):
    k = pl.program_id(2)

    @pl.when(k == 0)
    def _():
        acc_ref[...] = jnp.zeros_like(acc_ref)

    acc_ref[...] += jnp.dot(x_ref[...], w_ref[...],
                            preferred_element_type=jnp.float32)

    @pl.when(k == pl.num_programs(2) - 1)
    def _():
        o_ref[...] = acc_ref[...].astype(o_ref.dtype)


def _tile(dim, preferred, granule):
    """Largest tile <= preferred that divides dim, stepping by granule."""
    if dim <= preferred:
        return dim
    t = (preferred // granule) * granule
    while t >= granule:
        if dim % t == 0:
            return t
        t -= granule
    return dim


def linear(x, w, b=None, *, tm=256, tn=256, tk=512):
    """x: [M, K] @ w: [K, N] (+ b: [N]) -> [M, N]."""
    M, K = x.shape
    K2, N = w.shape
    assert K == K2
    tm = _tile(M, tm, 8)
    tn = _tile(N, tn, 128)
    tk = _tile(K, tk, 128)

    grid = (M // tm, N // tn, K // tk)
    x_spec = pl.BlockSpec((tm, tk), lambda i, j, k: (i, k))
    w_spec = pl.BlockSpec((tk, tn), lambda i, j, k: (k, j))
    o_spec = pl.BlockSpec((tm, tn), lambda i, j, k: (i, j))
    params = pltpu.CompilerParams(
        dimension_semantics=("parallel", "parallel", "arbitrary"))
    scratch = [pltpu.VMEM((tm, tn), jnp.float32)]

    if b is None:
        return pl.pallas_call(
            _linear_nobias_kernel,
            out_shape=jax.ShapeDtypeStruct((M, N), x.dtype),
            grid_spec=pltpu.PrefetchScalarGridSpec(
                num_scalar_prefetch=0, grid=grid,
                in_specs=[x_spec, w_spec], out_specs=o_spec,
                scratch_shapes=scratch),
            compiler_params=params,
        )(x, w)

    b2 = b.reshape(1, N)
    b_spec = pl.BlockSpec((1, tn), lambda i, j, k: (0, j))
    return pl.pallas_call(
        _linear_bias_kernel,
        out_shape=jax.ShapeDtypeStruct((M, N), x.dtype),
        grid_spec=pltpu.PrefetchScalarGridSpec(
            num_scalar_prefetch=0, grid=grid,
            in_specs=[x_spec, w_spec, b_spec], out_specs=o_spec,
            scratch_shapes=scratch),
        compiler_params=params,
    )(x, w, b2)


# ---------------------------------------------------------------------------
# Fused RoPE + causal GQA flash attention, reading the merged QKV tensor.
# ---------------------------------------------------------------------------
def _flash_attn_kernel(q_ref, k_ref, v_ref, cos_q_ref, sin_q_ref,
                       cos_k_ref, sin_k_ref, o_ref,
                       q_sc, m_sc, l_sc, acc_sc, *,
                       sm_scale, block_q, block_kv, group, head_dim, causal):
    qi = pl.program_id(1)
    ki = pl.program_id(2)
    half = head_dim // 2

    def rope(t, cos, sin_signed):
        # rotate_half via an XLU lane roll; sin_signed already carries the
        # sign flip on the first half (concat(-sin[:half], sin[half:])).
        return t * cos + pltpu.roll(t, shift=half, axis=1) * sin_signed

    # ---- first kv step: init accumulators, build RoPE'd / pre-scaled Q -----
    @pl.when(ki == 0)
    def _():
        m_sc[...] = jnp.full_like(m_sc, -jnp.inf)
        l_sc[...] = jnp.zeros_like(l_sc)
        acc_sc[...] = jnp.zeros_like(acc_sc)
        cos_q = cos_q_ref[...]
        sin_q = sin_q_ref[...]
        for g in range(group):  # stack the GQA group head-major into q_sc
            qg = q_ref[:, g * head_dim:(g + 1) * head_dim]
            q_sc[g * block_q:(g + 1) * block_q, :] = (
                rope(qg, cos_q, sin_q) * sm_scale).astype(q_sc.dtype)

    def attend(masked):
        k = rope(k_ref[...], cos_k_ref[...], sin_k_ref[...]).astype(k_ref.dtype)
        q = q_sc[...]
        # s: [group*block_q, block_kv] in f32 (q already carries 1/sqrt(hd)).
        s = jax.lax.dot_general(
            q, k, dimension_numbers=(((1,), (1,)), ((), ())),
            preferred_element_type=jnp.float32)
        if masked:  # only materialized on partially-masked (diagonal) blocks
            rows = jax.lax.broadcasted_iota(jnp.int32, s.shape, 0)
            cols = jax.lax.broadcasted_iota(jnp.int32, s.shape, 1)
            q_pos = qi * block_q + (rows % block_q)
            k_pos = ki * block_kv + cols
            s = jnp.where(q_pos >= k_pos, s, DEFAULT_MASK_VALUE)
        m_prev = m_sc[...]
        m_new = jnp.maximum(m_prev, s.max(axis=-1, keepdims=True))
        alpha = jnp.exp(m_prev - m_new)
        p = jnp.exp(s - m_new)
        l_sc[...] = alpha * l_sc[...] + p.sum(axis=-1, keepdims=True)
        acc_sc[...] = alpha * acc_sc[...] + jnp.dot(
            p.astype(v_ref.dtype), v_ref[...],
            preferred_element_type=jnp.float32)
        m_sc[...] = m_new

    if causal:
        q_lo = qi * block_q
        q_hi = q_lo + block_q
        k_lo = ki * block_kv
        k_hi = k_lo + block_kv
        needed = k_lo < q_hi          # block not fully masked -> do work
        unmasked = k_hi <= q_lo + 1   # block fully below the diagonal

        @pl.when(jnp.logical_and(needed, jnp.logical_not(unmasked)))
        def _():
            attend(masked=True)

        @pl.when(unmasked)
        def _():
            attend(masked=False)
    else:
        attend(masked=False)

    # ---- last kv step: normalize and write out in [S, nq*hd] layout --------
    @pl.when(ki == pl.num_programs(2) - 1)
    def _():
        inv_l = pl.reciprocal(l_sc[...], approx=True)
        inv_l = inv_l * (2.0 - l_sc[...] * inv_l)   # one Newton step (cheap, f32-exact)
        acc = acc_sc[...] * inv_l
        for g in range(group):
            o_ref[:, g * head_dim:(g + 1) * head_dim] = (
                acc[g * block_q:(g + 1) * block_q, :]).astype(o_ref.dtype)


def flash_attention_fused(qkv, cos, sin_signed, *, num_heads, num_kv_heads,
                          head_dim, causal=True, block_q=128, block_kv=128):
    """Fused RoPE + causal GQA flash attention on the merged QKV tensor.

    qkv:        [S, (nq + 2*nkv) * hd]   merged projection output
    cos:        [S, hd]
    sin_signed: [S, hd]  with the first half negated (rotate_half via roll)
    returns:    [S, nq * hd]             seq-major, ready for o_proj
    """
    S = qkv.shape[0]
    nq, nkv, hd = num_heads, num_kv_heads, head_dim
    assert nq % nkv == 0
    group = nq // nkv
    assert qkv.shape[1] == (nq + 2 * nkv) * hd
    assert hd % 128 == 0, "fused qkv column blocking needs lane-aligned heads"
    block_q = min(block_q, S)
    block_kv = min(block_kv, S)
    assert S % block_q == 0 and S % block_kv == 0
    sm_scale = 1.0 / math.sqrt(hd)

    if causal:
        def kv_block(i, j):
            # Clamp to the last kv block this q block interacts with, so skipped
            # iterations revisit the same block index (the fetch is elided).
            return jnp.minimum(j, (i * block_q + block_q - 1) // block_kv)
    else:
        def kv_block(i, j):
            return j

    q_spec = pl.BlockSpec((block_q, group * hd), lambda h, i, j: (i, h))
    k_spec = pl.BlockSpec((block_kv, hd),
                          lambda h, i, j: (kv_block(i, j), nq + h))
    v_spec = pl.BlockSpec((block_kv, hd),
                          lambda h, i, j: (kv_block(i, j), nq + nkv + h))
    cos_q_spec = pl.BlockSpec((block_q, hd), lambda h, i, j: (i, 0))
    sin_q_spec = pl.BlockSpec((block_q, hd), lambda h, i, j: (i, 0))
    cos_k_spec = pl.BlockSpec((block_kv, hd), lambda h, i, j: (kv_block(i, j), 0))
    sin_k_spec = pl.BlockSpec((block_kv, hd), lambda h, i, j: (kv_block(i, j), 0))
    o_spec = pl.BlockSpec((block_q, group * hd), lambda h, i, j: (i, h))

    kern = functools.partial(
        _flash_attn_kernel, sm_scale=sm_scale, block_q=block_q,
        block_kv=block_kv, group=group, head_dim=hd, causal=causal)

    return pl.pallas_call(
        kern,
        out_shape=jax.ShapeDtypeStruct((S, nq * hd), qkv.dtype),
        grid_spec=pltpu.PrefetchScalarGridSpec(
            num_scalar_prefetch=0,
            grid=(nkv, S // block_q, S // block_kv),
            in_specs=[q_spec, k_spec, v_spec,
                      cos_q_spec, sin_q_spec, cos_k_spec, sin_k_spec],
            out_specs=o_spec,
            scratch_shapes=[
                pltpu.VMEM((group * block_q, hd), qkv.dtype),    # roped+scaled q
                pltpu.VMEM((group * block_q, 1), jnp.float32),   # running max
                pltpu.VMEM((group * block_q, 1), jnp.float32),   # running denom
                pltpu.VMEM((group * block_q, hd), jnp.float32),  # output acc
            ]),
        compiler_params=pltpu.CompilerParams(
            dimension_semantics=("parallel", "parallel", "arbitrary")),
    )(qkv, qkv, qkv, cos, sin_signed, cos, sin_signed)


# ---------------------------------------------------------------------------
# Full Qwen2Attention forward (prefill, no KV cache).
# ---------------------------------------------------------------------------
def qwen2_attention_forward(hidden_states, w_qkv, b_qkv, w_o, cos, sin, *,
                            num_heads, num_kv_heads, head_dim,
                            block_q=128, block_kv=128):
    nq, nkv, hd = num_heads, num_kv_heads, head_dim

    # qkv_proj (merged column-parallel linear, bias=True)
    qkv = linear(hidden_states, w_qkv, b_qkv)

    # Sign-folded sin table so the kernel can use pltpu.roll for rotate_half.
    half = hd // 2
    sin_signed = jnp.concatenate([-sin[:, :half], sin[:, half:]], axis=-1)

    # Fused RoPE + causal GQA flash attention: reads q/k/v straight out of the
    # merged qkv tensor, writes [S, nq*hd] for o_proj (no transposes/reshapes).
    attn_out = flash_attention_fused(
        qkv, cos, sin_signed, num_heads=nq, num_kv_heads=nkv, head_dim=hd,
        causal=True, block_q=block_q, block_kv=block_kv)

    # o_proj (rowwise linear, bias=False) — no-bias kernel path.
    return linear(attn_out, w_o, None)


# ---------------------------------------------------------------------------
# Pure-JAX reference
# ---------------------------------------------------------------------------
def reference_attention(hidden, w_qkv, b_qkv, w_o, cos, sin, *,
                        num_heads, num_kv_heads, head_dim):
    S, _ = hidden.shape
    nq, nkv, hd = num_heads, num_kv_heads, head_dim
    x = hidden.astype(jnp.float32)
    qkv = x @ w_qkv.astype(jnp.float32) + b_qkv.astype(jnp.float32)
    q = qkv[:, :nq * hd].reshape(S, nq, hd)
    k = qkv[:, nq * hd:(nq + nkv) * hd].reshape(S, nkv, hd)
    v = qkv[:, (nq + nkv) * hd:].reshape(S, nkv, hd)

    c = cos.astype(jnp.float32)[:, None, :]
    s = sin.astype(jnp.float32)[:, None, :]

    def rope(t):
        t1, t2 = t[..., :hd // 2], t[..., hd // 2:]
        return t * c + jnp.concatenate([-t2, t1], axis=-1) * s

    q, k = rope(q), rope(k)

    group = nq // nkv
    kr = jnp.repeat(k, group, axis=1)
    vr = jnp.repeat(v, group, axis=1)

    qh = jnp.transpose(q, (1, 0, 2))
    kh = jnp.transpose(kr, (1, 0, 2))
    vh = jnp.transpose(vr, (1, 0, 2))

    scores = jnp.einsum('hqd,hkd->hqk', qh, kh) / math.sqrt(hd)
    mask = jnp.tril(jnp.ones((S, S), dtype=bool))
    scores = jnp.where(mask[None], scores, -jnp.inf)
    p = jax.nn.softmax(scores, axis=-1)
    o = jnp.einsum('hqk,hkd->hqd', p, vh)
    o = jnp.transpose(o, (1, 0, 2)).reshape(S, nq * hd)
    return (o @ w_o.astype(jnp.float32)).astype(hidden.dtype)


if __name__ == "__main__":
    # Small Qwen2-like config with the real head_dim=128:
    # seq=256, 4 q heads, 2 kv heads, head_dim=128 -> hidden=512.
    S, nq, nkv, hd = 256, 4, 2, 128
    H = nq * hd
    dqkv = (nq + 2 * nkv) * hd

    # Demo runs in f32 for a tight correctness check; real deployments should
    # pass bf16 activations/weights (kernels are dtype-generic, f32 accumulate).
    dtype = jnp.float32
    key = jax.random.PRNGKey(0)
    kx, kw, kb, ko = jax.random.split(key, 4)

    x = jax.random.normal(kx, (S, H), dtype=dtype)
    w_qkv = jax.random.normal(kw, (H, dqkv), dtype=dtype) * 0.05
    b_qkv = jax.random.normal(kb, (dqkv,), dtype=dtype) * 0.05
    w_o = jax.random.normal(ko, (nq * hd, H), dtype=dtype) * 0.05

    # Rotary tables (standard RoPE, base=10000), shared by kernel and reference.
    pos = jnp.arange(S, dtype=jnp.float32)
    inv_freq = 1.0 / (10000.0 ** (jnp.arange(0, hd, 2, dtype=jnp.float32) / hd))
    freqs = pos[:, None] * inv_freq[None, :]
    emb = jnp.concatenate([freqs, freqs], axis=-1)
    cos = jnp.cos(emb).astype(dtype)
    sin = jnp.sin(emb).astype(dtype)

    out = qwen2_attention_forward(x, w_qkv, b_qkv, w_o, cos, sin,
                                  num_heads=nq, num_kv_heads=nkv, head_dim=hd)
    out = jax.block_until_ready(out)

    ref = reference_attention(x, w_qkv, b_qkv, w_o, cos, sin,
                              num_heads=nq, num_kv_heads=nkv, head_dim=hd)
    assert out.shape == (S, H)
    max_err = float(jnp.max(jnp.abs(out - ref)))
    assert jnp.allclose(out, ref, atol=2e-3, rtol=2e-3), (
        f"mismatch vs reference, max abs err = {max_err}")

    print("KERNEL_OK")
</pallas_src>

<mosaic_0001>
module attributes {stable_mosaic.version = 11 : i64} {
  func.func @_linear_bias_kernel(%arg0: i32, %arg1: i32, %arg2: i32, %arg3: memref<256x512xf32, #tpu.memory_space<vmem>>, %arg4: memref<512x256xf32, #tpu.memory_space<vmem>>, %arg5: memref<1x256xf32, #tpu.memory_space<vmem>>, %arg6: memref<256x256xf32, #tpu.memory_space<vmem>>, %arg7: memref<256x256xf32, #tpu.memory_space<vmem>>) attributes {dimension_semantics = [#tpu.dimension_semantics<parallel>, #tpu.dimension_semantics<parallel>, #tpu.dimension_semantics<arbitrary>], iteration_bounds = array<i64: 1, 4, 1>, scalar_prefetch = 0 : i64, scratch_operands = 1 : i64, tpu.core_type = #tpu.core_type<tc>, window_params = [{transform_indices = @transform_0, window_bounds = array<i64: 256, 512>}, {transform_indices = @transform_1, window_bounds = array<i64: 512, 256>}, {transform_indices = @transform_2, window_bounds = array<i64: 1, 256>}, {transform_indices = @transform_3, window_bounds = array<i64: 256, 256>}]} {
    %c0_i32 = arith.constant 0 : i32
    %0 = arith.cmpi eq, %arg2, %c0_i32 : i32
    %1 = arith.extui %0 : i1 to i32
    %c0_i32_0 = arith.constant 0 : i32
    %2 = arith.cmpi ne, %1, %c0_i32_0 : i32
    scf.if %2 {
      %cst_10 = arith.constant 0.000000e+00 : f32
      %12 = vector.broadcast %cst_10 : f32 to vector<256x256xf32>
      %c0_11 = arith.constant 0 : index
      %c0_12 = arith.constant 0 : index
      %13 = vector.load %arg7[%c0_11, %c0_12] : memref<256x256xf32, #tpu.memory_space<vmem>>, vector<256x256xf32>
      tpu.vector_store %arg7[%c0_11, %c0_12], %12 {strides = array<i32>} : memref<256x256xf32, #tpu.memory_space<vmem>>, vector<256x256xf32>,
    } else {
    }
    %c0 = arith.constant 0 : index
    %c0_1 = arith.constant 0 : index
    %3 = vector.load %arg7[%c0, %c0_1] : memref<256x256xf32, #tpu.memory_space<vmem>>, vector<256x256xf32>
    %c0_2 = arith.constant 0 : index
    %c0_3 = arith.constant 0 : index
    %4 = vector.load %arg3[%c0_2, %c0_3] : memref<256x512xf32, #tpu.memory_space<vmem>>, vector<256x512xf32>
    %c0_4 = arith.constant 0 : index
    %c0_5 = arith.constant 0 : index
    %5 = vector.load %arg4[%c0_4, %c0_5] : memref<512x256xf32, #tpu.memory_space<vmem>>, vector<512x256xf32>
    %cst = arith.constant dense<0.000000e+00> : vector<256x256xf32>
    %6 = tpu.matmul %4, %5, %cst {dimension_numbers = #tpu.dot_dimension_numbers<[1], [0], [0], [1], [0, 0, 1, 1], [], []>} : vector<256x512xf32>, vector<512x256xf32>, vector<256x256xf32> -> vector<256x256xf32>
    %7 = arith.addf %3, %6 : vector<256x256xf32>
    %c0_6 = arith.constant 0 : index
    %c0_7 = arith.constant 0 : index
    %8 = vector.load %arg7[%c0_6, %c0_7] : memref<256x256xf32, #tpu.memory_space<vmem>>, vector<256x256xf32>
    tpu.vector_store %arg7[%c0_6, %c0_7], %7 {strides = array<i32>} : memref<256x256xf32, #tpu.memory_space<vmem>>, vector<256x256xf32>,
    %c0_i32_8 = arith.constant 0 : i32
    %9 = arith.cmpi eq, %arg2, %c0_i32_8 : i32
    %10 = arith.extui %9 : i1 to i32
    %c0_i32_9 = arith.constant 0 : i32
    %11 = arith.cmpi ne, %10, %c0_i32_9 : i32
    scf.if %11 {
      %c0_10 = arith.constant 0 : index
      %c0_11 = arith.constant 0 : index
      %12 = vector.load %arg7[%c0_10, %c0_11] : memref<256x256xf32, #tpu.memory_space<vmem>>, vector<256x256xf32>
      %c0_12 = arith.constant 0 : index
      %c0_13 = arith.constant 0 : index
      %13 = vector.load %arg5[%c0_12, %c0_13] : memref<1x256xf32, #tpu.memory_space<vmem>>, vector<1x256xf32>
      %14 = vector.broadcast %13 : vector<1x256xf32> to vector<256x256xf32>
      %15 = arith.addf %12, %14 : vector<256x256xf32>
      %c0_14 = arith.constant 0 : index
      %c0_15 = arith.constant 0 : index
      %16 = vector.load %arg6[%c0_14, %c0_15] : memref<256x256xf32, #tpu.memory_space<vmem>>, vector<256x256xf32>
      tpu.vector_store %arg6[%c0_14, %c0_15], %15 {strides = array<i32>} : memref<256x256xf32, #tpu.memory_space<vmem>>, vector<256x256xf32>,
    } else {
    }
    return
  }
  func.func @transform_0(%arg0: i32, %arg1: i32, %arg2: i32) -> (i32, i32) {
    %c0_i32 = arith.constant 0 : i32
    return %arg0, %arg2 : i32, i32
  }
  func.func @transform_1(%arg0: i32, %arg1: i32, %arg2: i32) -> (i32, i32) {
    %c0_i32 = arith.constant 0 : i32
    return %arg2, %arg1 : i32, i32
  }
  func.func @transform_2(%arg0: i32, %arg1: i32, %arg2: i32) -> (i32, i32) {
    %c0_i32 = arith.constant 0 : i32
    %c0_i32_0 = arith.constant 0 : i32
    return %c0_i32, %arg1 : i32, i32
  }
  func.func @transform_3(%arg0: i32, %arg1: i32, %arg2: i32) -> (i32, i32) {
    %c0_i32 = arith.constant 0 : i32
    return %arg0, %arg1 : i32, i32
  }
}

</mosaic_0001>

<llo_original>
// kernel: tpu_custom_call.1
$region0: #{tpu_custom_call.1}
  #allocation0 [shape = 'u32[]', space=smem, size = 0x4, offset = 0x4, fixed_abs, tag = 'smem constant byte address 0x4 - core index']
  #allocation1 [shape = 'u32[144,128]{1,0:T(1,128)}', space=vmem, size = 0x12000, scoped, tag = 'internal scratch']
  #allocation2 [shape = 'f32[256,256]{1,0:T(8,128)}', space=vmem, size = 0x40000, scoped, tag = 'scratch operand']
  %s0 = inlined_call_operand.hbm [shape: f32[256,512], index: 0, kind: input, shape index: {}]
  %s1 = inlined_call_operand.hbm [shape: f32[512,1024], index: 1, kind: input, shape index: {}]
  %s2 = inlined_call_operand.hbm [shape: f32[1,1024], index: 2, kind: input, shape index: {}]
  %s3 = inlined_call_operand.hbm [shape: f32[256,1024], index: 3, kind: output, shape index: {}]
  %s4 = sld [smem:[#allocation0]]
  $region65: #{tpu_custom_call.1} parent=0
    _
  %s6 = ssub.s32 1, %s4
  %s7 = scalar_select 0, %s6, %s4
  $region1: #{tpu_custom_call.1} parent=0
    #allocation3 [shape = 'u8[524288]{0}', space=vmem, size = 0x80000, scoped, tag = 'input window, operand 0, single buffered']
    #allocation4 [shape = 's32[2]{0}', space=sflag, size = 0x8, scoped, tag = 'scoped memory for tpu_custom_call.1']
    #allocation5 [shape = 's32[2]{0}', space=sflag, size = 0x8, scoped, tag = 'scoped memory for tpu_custom_call.1']
    #allocation6 [shape = 'u8[1048576]{0}', space=vmem, size = 0x100000, scoped, tag = 'input window, operand 1']
    #allocation7 [shape = 's32[2]{0}', space=sflag, size = 0x8, scoped, tag = 'scoped memory for tpu_custom_call.1']
    #allocation8 [shape = 'u8[2048]{0}', space=vmem, size = 0x800, scoped, tag = 'input window, operand 2']
    #allocation9 [shape = 'u8[524288]{0}', space=vmem, size = 0x80000, scoped, tag = 'output window, operand 0']
    %8 = vsyncpa [#allocation4], 0
    %9 = vsyncpa [#allocation7], 0
    %s10 = scalar_lea.sflag [#allocation7], 1
    %11 = vsyncpa %s10, 0
    %12 = vsyncpa [#allocation5], 0
    %s13 = scalar_lea.sflag [#allocation5], 1
    %14 = vsyncpa %s13, 0
    loop: start=0, step=1, limit=6
    $region2: #{tpu_custom_call.1} parent=1 // loop_pre_header
      _
    $region3: #{tpu_custom_call.1} parent=1 // loop_header
      %s16 = sphi 0, %s20
      %p17 = scmp.ge.s32.totalorder %s16, 6
      %s23 = sphi 0, %s42
      %s24 = sphi 0, %s38
      %s25 = sphi 0, %s34
      %s26 = sphi 0, %s23
      %s27 = sphi 0, %s24
      %s28 = sphi 0, %s25
      %s29 = sphi 0, %s26
      %s30 = sphi 0, %s27
      %s31 = sphi 0, %s28
      %s47 = sphi 0, %s49
      %s50 = sphi 0, %s47
      %s51 = sphi 0, %s50
      %s67 = sphi 0, %s51
      %s75 = sphi 0, %s77
      %s78 = sphi 0, %s75
      %s79 = sphi 0, %s78
      %s95 = sphi 0, %s79
      %s101 = sphi 0, %s103
      %s104 = sphi 0, %s101
      %s105 = sphi 0, %s104
      %s121 = sphi 0, %s105
      %s129 = sphi 0, %s131
      %s132 = sphi 0, %s129
      %s133 = sphi 0, %s132
      %s149 = sphi 0, %s133
    $region4: #{tpu_custom_call.1} parent=1 // loop_header_branch
      %19 = sbr.rel (%p17) target = $region8
    $region5: #{tpu_custom_call.1} parent=1 // loop_body
      %s21 = ssub.s32 %s16, 1
      %s22 = ssub.s32 %s16, 2
      %s32 = sadd.s32 1, %s25
      %p33 = scmp.ge.s32.totalorder %s32, 1
      %s34 = scalar_select %p33, 0, %s32
      %s35 = sadd.s32 1, %s24
      %s36 = scalar_select %p33, %s35, %s24
      %p37 = scmp.ge.s32.totalorder %s36, 4
      %s38 = scalar_select %p37, 0, %s36
      %s39 = sadd.s32 1, %s23
      %s40 = scalar_select %p37, %s39, %s23
      %p41 = scmp.ge.s32.totalorder %s40, 1
      %s42 = scalar_select %p41, 0, %s40
      %s43 = ssub.s32 %s23, %s42
      %s44 = ssub.s32 %s25, %s34
      %s45 = sor.u32 %s43, %s44
      %p46 = scmp.eq.s32.totalorder %s45, 0
      %s48 = sadd.s32 %s47, 1
      %s49 = scalar_select %p46, %s47, %s48
      %p52 = pneg %p46
      %p53 = scmp.eq.s32.totalorder %s16, 3
      %p54 = por %p52, %p53
      %p55 = scmp.ne.s32.totalorder %s47, %s50
      %p56 = scmp.eq.s32.totalorder %s16, 0
      %p57 = por %p55, %p56
      %p58 = scmp.ne.s32.totalorder %s47, %s50
      %p59 = scmp.eq.s32.totalorder %s21, 3
      %p60 = por %p58, %p59
      %p61 = scmp.ne.s32.totalorder %s50, %s51
      %p62 = scmp.eq.s32.totalorder %s21, 0
      %p63 = por %p61, %p62
      %p64 = scmp.ne.s32.totalorder %s50, %s51
      %p65 = scmp.eq.s32.totalorder %s22, 3
      %p66 = por %p64, %p65
      %p68 = scmp.ne.s32.totalorder %s51, %s67
      %p69 = scmp.eq.s32.totalorder %s22, 0
      %p70 = por %p68, %p69
      %s71 = ssub.s32 %s25, %s34
      %s72 = ssub.s32 %s24, %s38
      %s73 = sor.u32 %s71, %s72
      %p74 = scmp.eq.s32.totalorder %s73, 0
      %s76 = sadd.s32 %s75, 1
      %s77 = scalar_select %p74, %s75, %s76
      %p80 = pneg %p74
      %p81 = scmp.eq.s32.totalorder %s16, 3
      %p82 = por %p80, %p81
      %p83 = scmp.ne.s32.totalorder %s75, %s78
      %p84 = scmp.eq.s32.totalorder %s16, 0
      %p85 = por %p83, %p84
      %p86 = scmp.ne.s32.totalorder %s75, %s78
      %p87 = scmp.eq.s32.totalorder %s21, 3
      %p88 = por %p86, %p87
      %p89 = scmp.ne.s32.totalorder %s78, %s79
      %p90 = scmp.eq.s32.totalorder %s21, 0
      %p91 = por %p89, %p90
      %p92 = scmp.ne.s32.totalorder %s78, %s79
      %p93 = scmp.eq.s32.totalorder %s22, 3
      %p94 = por %p92, %p93
      %p96 = scmp.ne.s32.totalorder %s79, %s95
      %p97 = scmp.eq.s32.totalorder %s22, 0
      %p98 = por %p96, %p97
      %s99 = ssub.s32 %s24, %s38
      %p100 = scmp.eq.s32.totalorder %s99, 0
      %s102 = sadd.s32 %s101, 1
      %s103 = scalar_select %p100, %s101, %s102
      %p106 = pneg %p100
      %p107 = scmp.eq.s32.totalorder %s16, 3
      %p108 = por %p106, %p107
      %p109 = scmp.ne.s32.totalorder %s101, %s104
      %p110 = scmp.eq.s32.totalorder %s16, 0
      %p111 = por %p109, %p110
      %p112 = scmp.ne.s32.totalorder %s101, %s104
      %p113 = scmp.eq.s32.totalorder %s21, 3
      %p114 = por %p112, %p113
      %p115 = scmp.ne.s32.totalorder %s104, %s105
      %p116 = scmp.eq.s32.totalorder %s21, 0
      %p117 = por %p115, %p116
      %p118 = scmp.ne.s32.totalorder %s104, %s105
      %p119 = scmp.eq.s32.totalorder %s22, 3
      %p120 = por %p118, %p119
      %p122 = scmp.ne.s32.totalorder %s105, %s121
      %p123 = scmp.eq.s32.totalorder %s22, 0
      %p124 = por %p122, %p123
      %s125 = ssub.s32 %s23, %s42
      %s126 = ssub.s32 %s24, %s38
      %s127 = sor.u32 %s125, %s126
      %p128 = scmp.eq.s32.totalorder %s127, 0
      %s130 = sadd.s32 %s129, 1
      %s131 = scalar_select %p128, %s129, %s130
      %p134 = pneg %p128
      %p135 = scmp.eq.s32.totalorder %s16, 3
      %p136 = por %p134, %p135
      %p137 = scmp.ne.s32.totalorder %s129, %s132
      %p138 = scmp.eq.s32.totalorder %s16, 0
      %p139 = por %p137, %p138
      %p140 = scmp.ne.s32.totalorder %s129, %s132
      %p141 = scmp.eq.s32.totalorder %s21, 3
      %p142 = por %p140, %p141
      %p143 = scmp.ne.s32.totalorder %s132, %s133
      %p144 = scmp.eq.s32.totalorder %s21, 0
      %p145 = por %p143, %p144
      %p146 = scmp.ne.s32.totalorder %s132, %s133
      %p147 = scmp.eq.s32.totalorder %s22, 3
      %p148 = por %p146, %p147
      %p150 = scmp.ne.s32.totalorder %s133, %s149
      %p151 = scmp.eq.s32.totalorder %s22, 0
      %p152 = por %p150, %p151
      %p153 = scmp.le.s32.totalorder 1, %s16
      %p154 = scmp.lt.s32.totalorder %s16, 5
      %p155 = pnand %p153, %p154
      %p156 = pneg %p155
      // Predicated region
      $region9: #{tpu_custom_call.1} parent=5 // pred_check
        _
      $region10: #{tpu_custom_call.1} parent=5 // pred_check_branch
        %158 = sbr.rel (%p155) target = $region12
      $region11: #{tpu_custom_call.1} parent=5 // pred_region
        %s159 = ssub.s32 %s16, 1
        // Predicated region
        $region13: #{tpu_custom_call.1} parent=11 // pred_check
          %p160 = pneg %p63
        $region14: #{tpu_custom_call.1} parent=11 // pred_check_branch
          %162 = sbr.rel (%p160) target = $region16
        $region15: #{tpu_custom_call.1} parent=11 // pred_region
          %s163 = smul.u32 32, %s26
          %s164 = smul.u32 4, %s28
          %s166 = ssub.s32 16384, 16384
          %167 = vsyncadd [#allocation4], %s166
          %s168 = smul.addr %s163, 4
          %s169 = sadd.s32 %s164, %s168
          %s170 = smul.addr %s169, 128
          %s171 = scalar_lea.hbm %s0, %s170
          %s172 = sshll.u32 [#allocation3], 4
          %s173 = int_to_ptr.vmem [resolvable:$true] %s172
          %178 = dma.hbm_to_vmem [thread:$0]  %s171, 16384, %s173, [#allocation4], 512, 512, 32
        $region16: #{tpu_custom_call.1} parent=11 // pred_fallthru
          _
      $region12: #{tpu_custom_call.1} parent=5 // pred_fallthru
        _
      %p179 = scmp.lt.s32.totalorder %s16, 4
      // Predicated region
      $region17: #{tpu_custom_call.1} parent=5 // pred_check
        %p180 = pneg %p179
      $region18: #{tpu_custom_call.1} parent=5 // pred_check_branch
        %182 = sbr.rel (%p180) target = $region20
      $region19: #{tpu_custom_call.1} parent=5 // pred_region
        // Predicated region
        $region21: #{tpu_custom_call.1} parent=19 // pred_check
          %p183 = pneg %p85
        $region22: #{tpu_custom_call.1} parent=19 // pred_check_branch
          %185 = sbr.rel (%p183) target = $region24
        $region23: #{tpu_custom_call.1} parent=19 // pred_region
          %s186 = sand.u32 %s16, 1
          %s187 = scalar_lea.sflag [#allocation7], %s186
          %s188 = sand.u32 %s75, 1
          %s189 = smul.addr %s188, 1024
          %s190 = scalar_lea.vmem [#allocation6], %s189
          %s191 = smul.u32 64, %s25
          %s192 = smul.u32 2, %s24
          %s194 = ssub.s32 16384, 16384
          %195 = vsyncadd %s187, %s194
          %s196 = smul.addr %s191, 8
          %s197 = sadd.s32 %s192, %s196
          %s198 = smul.addr %s197, 128
          %s199 = scalar_lea.hbm %s1, %s198
          %s200 = sshll.u32 %s190, 4
          %s201 = int_to_ptr.vmem [resolvable:$true] %s200
          %206 = dma.hbm_to_vmem [thread:$0]  %s199, 16384, %s201, %s187, 1024, 256, 16
        $region24: #{tpu_custom_call.1} parent=19 // pred_fallthru
          _
        // Predicated region
        $region25: #{tpu_custom_call.1} parent=19 // pred_check
          %p207 = pneg %p111
        $region26: #{tpu_custom_call.1} parent=19 // pred_check_branch
          %209 = sbr.rel (%p207) target = $region28
        $region27: #{tpu_custom_call.1} parent=19 // pred_region
          %s210 = sand.u32 %s16, 1
          %s211 = scalar_lea.sflag [#allocation7], %s210
          %s212 = sand.u32 %s101, 1
          %s213 = smul.addr %s212, 2
          %s214 = scalar_lea.vmem [#allocation8], %s213
          %s215 = smul.u32 2, %s24
          %s217 = ssub.s32 32, 32
          %218 = vsyncadd %s211, %s217
          %s219 = smul.addr %s215, 16
          %s220 = scalar_lea.hbm %s2, %s219
          %s222 = sshll.u32 %s214, 4
          %s223 = int_to_ptr.vmem [resolvable:$true] %s222
          %225 = dma.hbm_to_vmem [thread:$0]  %s220, 32, %s223, %s211
        $region28: #{tpu_custom_call.1} parent=19 // pred_fallthru
          _
      $region20: #{tpu_custom_call.1} parent=5 // pred_fallthru
        _
      %p226 = scmp.le.s32.totalorder 1, %s16
      %p227 = scmp.lt.s32.totalorder %s16, 5
      %p228 = pnand %p226, %p227
      %p229 = pneg %p228
      // Predicated region
      $region29: #{tpu_custom_call.1} parent=5 // pred_check
        _
      $region30: #{tpu_custom_call.1} parent=5 // pred_check_branch
        %231 = sbr.rel (%p228) target = $region32
      $region31: #{tpu_custom_call.1} parent=5 // pred_region
        %s232 = ssub.s32 %s16, 1
        // Predicated region
        $region33: #{tpu_custom_call.1} parent=31 // pred_check
          %p233 = pneg %p63
        $region34: #{tpu_custom_call.1} parent=31 // pred_check_branch
          %235 = sbr.rel (%p233) target = $region36
        $region35: #{tpu_custom_call.1} parent=31 // pred_region
          %236 = dma.done [#allocation4], 16384
        $region36: #{tpu_custom_call.1} parent=31 // pred_fallthru
          _
        %s237 = sand.u32 %s21, 1
        %s238 = scalar_lea.sflag [#allocation7], %s237
        %s239 = sand.u32 %s78, 1
        %s240 = smul.addr %s239, 1024
        %s241 = scalar_lea.vmem [#allocation6], %s240
        // Predicated region
        $region37: #{tpu_custom_call.1} parent=31 // pred_check
          %p242 = pneg %p91
        $region38: #{tpu_custom_call.1} parent=31 // pred_check_branch
          %244 = sbr.rel (%p242) target = $region40
        $region39: #{tpu_custom_call.1} parent=31 // pred_region
          %245 = dma.done %s238, 16384
        $region40: #{tpu_custom_call.1} parent=31 // pred_fallthru
          _
        %s246 = sand.u32 %s21, 1
        %s247 = scalar_lea.sflag [#allocation7], %s246
        %s248 = sand.u32 %s104, 1
        %s249 = smul.addr %s248, 2
        %s250 = scalar_lea.vmem [#allocation8], %s249
        // Predicated region
        $region41: #{tpu_custom_call.1} parent=31 // pred_check
          %p251 = pneg %p117
        $region42: #{tpu_custom_call.1} parent=31 // pred_check_branch
          %253 = sbr.rel (%p251) target = $region44
        $region43: #{tpu_custom_call.1} parent=31 // pred_region
          %254 = dma.done %s247, 32
        $region44: #{tpu_custom_call.1} parent=31 // pred_fallthru
          _
        %p255 = pneg %p63
        %p256 = pneg %p60
        %s257 = sand.u32 %s21, 1
        %s258 = scalar_lea.sflag [#allocation7], %s257
        %s259 = sand.u32 %s78, 1
        %s260 = smul.addr %s259, 1024
        %s261 = scalar_lea.vmem [#allocation6], %s260
        %p262 = pneg %p91
        %p263 = pneg %p88
        %s264 = sand.u32 %s21, 1
        %s265 = scalar_lea.sflag [#allocation7], %s264
        %s266 = sand.u32 %s104, 1
        %s267 = smul.addr %s266, 2
        %s268 = scalar_lea.vmem [#allocation8], %s267
        %p269 = pneg %p117
        %p270 = pneg %p114
        %p271 = pneg %p145
        %p272 = pneg %p142
        %s273 = sand.u32 %s132, 1
        %s274 = scalar_lea.sflag [#allocation5], %s273
        %s275 = sand.u32 %s132, 1
        %s276 = smul.addr %s275, 512
        %s277 = scalar_lea.vmem [#allocation9], %s276
        %s278 = smul.u32 32, %s26
        %s279 = smul.u32 4, %s28
        %s280 = smul.u32 64, %s28
        %s281 = smul.u32 2, %s27
        %s282 = smul.u32 2, %s27
        %s283 = smul.u32 32, %s26
        %s284 = smul.u32 2, %s27
        %p285 = scmp.eq.s32.totalorder %s28, 0
        // Predicated region
        $region45: #{tpu_custom_call.1} parent=31 // pred_check
          %p286 = pneg %p285
        $region46: #{tpu_custom_call.1} parent=31 // pred_check_branch
          %288 = sbr.rel (%p286) target = $region48
        $region47: #{tpu_custom_call.1} parent=31 // pred_region
          %289 = vst [vmem:[#allocation2] sm:$0xff] 0.0
          %290 = vst [vmem:[#allocation2 + $0x8] sm:$0xff] 0.0
          %291 = vst [vmem:[#allocation2 + $0x10] sm:$0xff] 0.0
          %292 = vst [vmem:[#allocation2 + $0x18] sm:$0xff] 0.0
          %293 = vst [vmem:[#allocation2 + $0x20] sm:$0xff] 0.0
          %294 = vst [vmem:[#allocation2 + $0x28] sm:$0xff] 0.0
          %295 = vst [vmem:[#allocation2 + $0x30] sm:$0xff] 0.0
          %296 = vst [vmem:[#allocation2 + $0x38] sm:$0xff] 0.0
          %297 = vst [vmem:[#allocation2 + $0x40] sm:$0xff] 0.0
          %298 = vst [vmem:[#allocation2 + $0x48] sm:$0xff] 0.0
          %299 = vst [vmem:[#allocation2 + $0x50] sm:$0xff] 0.0
          %300 = vst [vmem:[#allocation2 + $0x58] sm:$0xff] 0.0
          %301 = vst [vmem:[#allocation2 + $0x60] sm:$0xff] 0.0
          %302 = vst [vmem:[#allocation2 + $0x68] sm:$0xff] 0.0
          %303 = vst [vmem:[#allocation2 + $0x70] sm:$0xff] 0.0
          %304 = vst [vmem:[#allocation2 + $0x78] sm:$0xff] 0.0
          %305 = vst [vmem:[#allocation2 + $0x80] sm:$0xff] 0.0
          %306 = vst [vmem:[#allocation2 + $0x88] sm:$0xff] 0.0
          %307 = vst [vmem:[#allocation2 + $0x90] sm:$0xff] 0.0
          %308 = vst [vmem:[#allocation2 + $0x98] sm:$0xff] 0.0
          %309 = vst [vmem:[#allocation2 + $0xa0] sm:$0xff] 0.0
          %310 = vst [vmem:[#allocation2 + $0xa8] sm:$0xff] 0.0
          %311 = vst [vmem:[#allocation2 + $0xb0] sm:$0xff] 0.0
          %312 = vst [vmem:[#allocation2 + $0xb8] sm:$0xff] 0.0
          %313 = vst [vmem:[#allocation2 + $0xc0] sm:$0xff] 0.0
          %314 = vst [vmem:[#allocation2 + $0xc8] sm:$0xff] 0.0
          %315 = vst [vmem:[#allocation2 + $0xd0] sm:$0xff] 0.0
          %316 = vst [vmem:[#allocation2 + $0xd8] sm:$0xff] 0.0
          %317 = vst [vmem:[#allocation2 + $0xe0] sm:$0xff] 0.0
          %318 = vst [vmem:[#allocation2 + $0xe8] sm:$0xff] 0.0
          %319 = vst [vmem:[#allocation2 + $0xf0] sm:$0xff] 0.0
          %320 = vst [vmem:[#allocation2 + $0xf8] sm:$0xff] 0.0
          %321 = vst [vmem:[#allocation2 + $0x100] sm:$0xff] 0.0
          %322 = vst [vmem:[#allocation2 + $0x108] sm:$0xff] 0.0
          %323 = vst [vmem:[#allocation2 + $0x110] sm:$0xff] 0.0
          %324 = vst [vmem:[#allocation2 + $0x118] sm:$0xff] 0.0
          %325 = vst [vmem:[#allocation2 + $0x120] sm:$0xff] 0.0
          %326 = vst [vmem:[#allocation2 + $0x128] sm:$0xff] 0.0
          %327 = vst [vmem:[#allocation2 + $0x130] sm:$0xff] 0.0
          %328 = vst [vmem:[#allocation2 + $0x138] sm:$0xff] 0.0
          %329 = vst [vmem:[#allocation2 + $0x140] sm:$0xff] 0.0
          %330 = vst [vmem:[#allocation2 + $0x148] sm:$0xff] 0.0
          %331 = vst [vmem:[#allocation2 + $0x150] sm:$0xff] 0.0
          %332 = vst [vmem:[#allocation2 + $0x158] sm:$0xff] 0.0
          %333 = vst [vmem:[#allocation2 + $0x160] sm:$0xff] 0.0
          %334 = vst [vmem:[#allocation2 + $0x168] sm:$0xff] 0.0
          %335 = vst [vmem:[#allocation2 + $0x170] sm:$0xff] 0.0
          %336 = vst [vmem:[#allocation2 + $0x178] sm:$0xff] 0.0
          %337 = vst [vmem:[#allocation2 + $0x180] sm:$0xff] 0.0
          %338 = vst [vmem:[#allocation2 + $0x188] sm:$0xff] 0.0
          %339 = vst [vmem:[#allocation2 + $0x190] sm:$0xff] 0.0
          %340 = vst [vmem:[#allocation2 + $0x198] sm:$0xff] 0.0
          %341 = vst [vmem:[#allocation2 + $0x1a0] sm:$0xff] 0.0
          %342 = vst [vmem:[#allocation2 + $0x1a8] sm:$0xff] 0.0
          %343 = vst [vmem:[#allocation2 + $0x1b0] sm:$0xff] 0.0
          %344 = vst [vmem:[#allocation2 + $0x1b8] sm:$0xff] 0.0
          %345 = vst [vmem:[#allocation2 + $0x1c0] sm:$0xff] 0.0
          %346 = vst [vmem:[#allocation2 + $0x1c8] sm:$0xff] 0.0
          %347 = vst [vmem:[#allocation2 + $0x1d0] sm:$0xff] 0.0
          %348 = vst [vmem:[#allocation2 + $0x1d8] sm:$0xff] 0.0
          %349 = vst [vmem:[#allocation2 + $0x1e0] sm:$0xff] 0.0
          %350 = vst [vmem:[#allocation2 + $0x1e8] sm:$0xff] 0.0
          %351 = vst [vmem:[#allocation2 + $0x1f0] sm:$0xff] 0.0
          %352 = vst [vmem:[#allocation2 + $0x1f8] sm:$0xff] 0.0
        $region48: #{tpu_custom_call.1} parent=31 // pred_fallthru
          _
        %v353 = vld [vmem:[#allocation2] sm:$0xff]
        %v354 = vld [vmem:[#allocation2 + $0x8] sm:$0xff]
        %v355 = vld [vmem:[#allocation2 + $0x10] sm:$0xff]
        %v356 = vld [vmem:[#allocation2 + $0x18] sm:$0xff]
        %v357 = vld [vmem:[#allocation2 + $0x20] sm:$0xff]
        %v358 = vld [vmem:[#allocation2 + $0x28] sm:$0xff]
        %v359 = vld [vmem:[#allocation2 + $0x30] sm:$0xff]
        %v360 = vld [vmem:[#allocation2 + $0x38] sm:$0xff]
        %v361 = vld [vmem:[#allocation2 + $0x40] sm:$0xff]
        %v362 = vld [vmem:[#allocation2 + $0x48] sm:$0xff]
        %v363 = vld [vmem:[#allocation2 + $0x50] sm:$0xff]
        %v364 = vld [vmem:[#allocation2 + $0x58] sm:$0xff]
        %v365 = vld [vmem:[#allocation2 + $0x60] sm:$0xff]
        %v366 = vld [vmem:[#allocation2 + $0x68] sm:$0xff]
        %v367 = vld [vmem:[#allocation2 + $0x70] sm:$0xff]
        %v368 = vld [vmem:[#allocation2 + $0x78] sm:$0xff]
        %v369 = vld [vmem:[#allocation2 + $0x80] sm:$0xff]
        %v370 = vld [vmem:[#allocation2 + $0x88] sm:$0xff]
        %v371 = vld [vmem:[#allocation2 + $0x90] sm:$0xff]
        %v372 = vld [vmem:[#allocation2 + $0x98] sm:$0xff]
        %v373 = vld [vmem:[#allocation2 + $0xa0] sm:$0xff]
        %v374 = vld [vmem:[#allocation2 + $0xa8] sm:$0xff]
        %v375 = vld [vmem:[#allocation2 + $0xb0] sm:$0xff]
        %v376 = vld [vmem:[#allocation2 + $0xb8] sm:$0xff]
        %v377 = vld [vmem:[#allocation2 + $0xc0] sm:$0xff]
        %v378 = vld [vmem:[#allocation2 + $0xc8] sm:$0xff]
        %v379 = vld [vmem:[#allocation2 + $0xd0] sm:$0xff]
        %v380 = vld [vmem:[#allocation2 + $0xd8] sm:$0xff]
        %v381 = vld [vmem:[#allocation2 + $0xe0] sm:$0xff]
        %v382 = vld [vmem:[#allocation2 + $0xe8] sm:$0xff]
        %v383 = vld [vmem:[#allocation2 + $0xf0] sm:$0xff]
        %v384 = vld [vmem:[#allocation2 + $0xf8] sm:$0xff]
        %v385 = vld [vmem:[#allocation2 + $0x100] sm:$0xff]
        %v386 = vld [vmem:[#allocation2 + $0x108] sm:$0xff]
        %v387 = vld [vmem:[#allocation2 + $0x110] sm:$0xff]
        %v388 = vld [vmem:[#allocation2 + $0x118] sm:$0xff]
        %v389 = vld [vmem:[#allocation2 + $0x120] sm:$0xff]
        %v390 = vld [vmem:[#allocation2 + $0x128] sm:$0xff]
        %v391 = vld [vmem:[#allocation2 + $0x130] sm:$0xff]
        %v392 = vld [vmem:[#allocation2 + $0x138] sm:$0xff]
        %v393 = vld [vmem:[#allocation2 + $0x140] sm:$0xff]
        %v394 = vld [vmem:[#allocation2 + $0x148] sm:$0xff]
        %v395 = vld [vmem:[#allocation2 + $0x150] sm:$0xff]
        %v396 = vld [vmem:[#allocation2 + $0x158] sm:$0xff]
        %v397 = vld [vmem:[#allocation2 + $0x160] sm:$0xff]
        %v398 = vld [vmem:[#allocation2 + $0x168] sm:$0xff]
        %v399 = vld [vmem:[#allocation2 + $0x170] sm:$0xff]
        %v400 = vld [vmem:[#allocation2 + $0x178] sm:$0xff]
        %v401 = vld [vmem:[#allocation2 + $0x180] sm:$0xff]
        %v402 = vld [vmem:[#allocation2 + $0x188] sm:$0xff]
        %v403 = vld [vmem:[#allocation2 + $0x190] sm:$0xff]
        %v404 = vld [vmem:[#allocation2 + $0x198] sm:$0xff]
        %v405 = vld [vmem:[#allocation2 + $0x1a0] sm:$0xff]
        %v406 = vld [vmem:[#allocation2 + $0x1a8] sm:$0xff]
        %v407 = vld [vmem:[#allocation2 + $0x1b0] sm:$0xff]
        %v408 = vld [vmem:[#allocation2 + $0x1b8] sm:$0xff]
        %v409 = vld [vmem:[#allocation2 + $0x1c0] sm:$0xff]
        %v410 = vld [vmem:[#allocation2 + $0x1c8] sm:$0xff]
        %v411 = vld [vmem:[#allocation2 + $0x1d0] sm:$0xff]
        %v412 = vld [vmem:[#allocation2 + $0x1d8] sm:$0xff]
        %v413 = vld [vmem:[#allocation2 + $0x1e0] sm:$0xff]
        %v414 = vld [vmem:[#allocation2 + $0x1e8] sm:$0xff]
        %v415 = vld [vmem:[#allocation2 + $0x1f0] sm:$0xff]
        %v416 = vld [vmem:[#allocation2 + $0x1f8] sm:$0xff]
        %v417 = vld [vmem:[#allocation3] sm:$0xff]
        %v418 = vld [vmem:[#allocation3 + $0x8] sm:$0xff]
        %v419 = vld [vmem:[#allocation3 + $0x10] sm:$0xff]
        %v420 = vld [vmem:[#allocation3 + $0x18] sm:$0xff]
        %v421 = vld [vmem:[#allocation3 + $0x20] sm:$0xff]
        %v422 = vld [vmem:[#allocation3 + $0x28] sm:$0xff]
        %v423 = vld [vmem:[#allocation3 + $0x30] sm:$0xff]
        %v424 = vld [vmem:[#allocation3 + $0x38] sm:$0xff]
        %v425 = vld [vmem:[#allocation3 + $0x40] sm:$0xff]
        %v426 = vld [vmem:[#allocation3 + $0x48] sm:$0xff]
        %v427 = vld [vmem:[#allocation3 + $0x50] sm:$0xff]
        %v428 = vld [vmem:[#allocation3 + $0x58] sm:$0xff]
        %v429 = vld [vmem:[#allocation3 + $0x60] sm:$0xff]
        %v430 = vld [vmem:[#allocation3 + $0x68] sm:$0xff]
        %v431 = vld [vmem:[#allocation3 + $0x70] sm:$0xff]
        %v432 = vld [vmem:[#allocation3 + $0x78] sm:$0xff]
        %v433 = vld [vmem:[#allocation3 + $0x80] sm:$0xff]
        %v434 = vld [vmem:[#allocation3 + $0x88] sm:$0xff]
        %v435 = vld [vmem:[#allocation3 + $0x90] sm:$0xff]
        %v436 = vld [vmem:[#allocation3 + $0x98] sm:$0xff]
        %v437 = vld [vmem:[#allocation3 + $0xa0] sm:$0xff]
        %v438 = vld [vmem:[#allocation3 + $0xa8] sm:$0xff]
        %v439 = vld [vmem:[#allocation3 + $0xb0] sm:$0xff]
        %v440 = vld [vmem:[#allocation3 + $0xb8] sm:$0xff]
        %v441 = vld [vmem:[#allocation3 + $0xc0] sm:$0xff]
        %v442 = vld [vmem:[#allocation3 + $0xc8] sm:$0xff]
        %v443 = vld [vmem:[#allocation3 + $0xd0] sm:$0xff]
        %v444 = vld [vmem:[#allocation3 + $0xd8] sm:$0xff]
        %v445 = vld [vmem:[#allocation3 + $0xe0] sm:$0xff]
        %v446 = vld [vmem:[#allocation3 + $0xe8] sm:$0xff]
        %v447 = vld [vmem:[#allocation3 + $0xf0] sm:$0xff]
        %v448 = vld [vmem:[#allocation3 + $0xf8] sm:$0xff]
        %v449 = vld [vmem:[#allocation3 + $0x100] sm:$0xff]
        %v450 = vld [vmem:[#allocation3 + $0x108] sm:$0xff]
        %v451 = vld [vmem:[#allocation3 + $0x110] sm:$0xff]
        %v452 = vld [vmem:[#allocation3 + $0x118] sm:$0xff]
        %v453 = vld [vmem:[#allocation3 + $0x120] sm:$0xff]
        %v454 = vld [vmem:[#allocation3 + $0x128] sm:$0xff]
        %v455 = vld [vmem:[#allocation3 + $0x130] sm:$0xff]
        %v456 = vld [vmem:[#allocation3 + $0x138] sm:$0xff]
        %v457 = vld [vmem:[#allocation3 + $0x140] sm:$0xff]
        %v458 = vld [vmem:[#allocation3 + $0x148] sm:$0xff]
        %v459 = vld [vmem:[#allocation3 + $0x150] sm:$0xff]
        %v460 = vld [vmem:[#allocation3 + $0x158] sm:$0xff]
        %v461 = vld [vmem:[#allocation3 + $0x160] sm:$0xff]
        %v462 = vld [vmem:[#allocation3 + $0x168] sm:$0xff]
        %v463 = vld [vmem:[#allocation3 + $0x170] sm:$0xff]
        %v464 = vld [vmem:[#allocation3 + $0x178] sm:$0xff]
        %v465 = vld [vmem:[#allocation3 + $0x180] sm:$0xff]
        %v466 = vld [vmem:[#allocation3 + $0x188] sm:$0xff]
        %v467 = vld [vmem:[#allocation3 + $0x190] sm:$0xff]
        %v468 = vld [vmem:[#allocation3 + $0x198] sm:$0xff]
        %v469 = vld [vmem:[#allocation3 + $0x1a0] sm:$0xff]
        %v470 = vld [vmem:[#allocation3 + $0x1a8] sm:$0xff]
        %v471 = vld [vmem:[#allocation3 + $0x1b0] sm:$0xff]
        %v472 = vld [vmem:[#allocation3 + $0x1b8] sm:$0xff]
        %v473 = vld [vmem:[#allocation3 + $0x1c0] sm:$0xff]
        %v474 = vld [vmem:[#allocation3 + $0x1c8] sm:$0xff]
        %v475 = vld [vmem:[#allocation3 + $0x1d0] sm:$0xff]
        %v476 = vld [vmem:[#allocation3 + $0x1d8] sm:$0xff]
        %v477 = vld [vmem:[#allocation3 + $0x1e0] sm:$0xff]
        %v478 = vld [vmem:[#allocation3 + $0x1e8] sm:$0xff]
        %v479 = vld [vmem:[#allocation3 + $0x1f0] sm:$0xff]
        %v480 = vld [vmem:[#allocation3 + $0x1f8] sm:$0xff]
        %v481 = vld [vmem:[#allocation3 + $0x200] sm:$0xff]
        %v482 = vld [vmem:[#allocation3 + $0x208] sm:$0xff]
        %v483 = vld [vmem:[#allocation3 + $0x210] sm:$0xff]
        %v484 = vld [vmem:[#allocation3 + $0x218] sm:$0xff]
        %v485 = vld [vmem:[#allocation3 + $0x220] sm:$0xff]
        %v486 = vld [vmem:[#allocation3 + $0x228] sm:$0xff]
        %v487 = vld [vmem:[#allocation3 + $0x230] sm:$0xff]
        %v488 = vld [vmem:[#allocation3 + $0x238] sm:$0xff]
        %v489 = vld [vmem:[#allocation3 + $0x240] sm:$0xff]
        %v490 = vld [vmem:[#allocation3 + $0x248] sm:$0xff]
        %v491 = vld [vmem:[#allocation3 + $0x250] sm:$0xff]
        %v492 = vld [vmem:[#allocation3 + $0x258] sm:$0xff]
        %v493 = vld [vmem:[#allocation3 + $0x260] sm:$0xff]
        %v494 = vld [vmem:[#allocation3 + $0x268] sm:$0xff]
        %v495 = vld [vmem:[#allocation3 + $0x270] sm:$0xff]
        %v496 = vld [vmem:[#allocation3 + $0x278] sm:$0xff]
        %v497 = vld [vmem:[#allocation3 + $0x280] sm:$0xff]
        %v498 = vld [vmem:[#allocation3 + $0x288] sm:$0xff]
        %v499 = vld [vmem:[#allocation3 + $0x290] sm:$0xff]
        %v500 = vld [vmem:[#allocation3 + $0x298] sm:$0xff]
        %v501 = vld [vmem:[#allocation3 + $0x2a0] sm:$0xff]
        %v502 = vld [vmem:[#allocation3 + $0x2a8] sm:$0xff]
        %v503 = vld [vmem:[#allocation3 + $0x2b0] sm:$0xff]
        %v504 = vld [vmem:[#allocation3 + $0x2b8] sm:$0xff]
        %v505 = vld [vmem:[#allocation3 + $0x2c0] sm:$0xff]
        %v506 = vld [vmem:[#allocation3 + $0x2c8] sm:$0xff]
        %v507 = vld [vmem:[#allocation3 + $0x2d0] sm:$0xff]
        %v508 = vld [vmem:[#allocation3 + $0x2d8] sm:$0xff]
        %v509 = vld [vmem:[#allocation3 + $0x2e0] sm:$0xff]
        %v510 = vld [vmem:[#allocation3 + $0x2e8] sm:$0xff]
        %v511 = vld [vmem:[#allocation3 + $0x2f0] sm:$0xff]
        %v512 = vld [vmem:[#allocation3 + $0x2f8] sm:$0xff]
        %v513 = vld [vmem:[#allocation3 + $0x300] sm:$0xff]
        %v514 = vld [vmem:[#allocation3 + $0x308] sm:$0xff]
        %v515 = vld [vmem:[#allocation3 + $0x310] sm:$0xff]
        %v516 = vld [vmem:[#allocation3 + $0x318] sm:$0xff]
        %v517 = vld [vmem:[#allocation3 + $0x320] sm:$0xff]
        %v518 = vld [vmem:[#allocation3 + $0x328] sm:$0xff]
        %v519 = vld [vmem:[#allocation3 + $0x330] sm:$0xff]
        %v520 = vld [vmem:[#allocation3 + $0x338] sm:$0xff]
        %v521 = vld [vmem:[#allocation3 + $0x340] sm:$0xff]
        %v522 = vld [vmem:[#allocation3 + $0x348] sm:$0xff]
        %v523 = vld [vmem:[#allocation3 + $0x350] sm:$0xff]
        %v524 = vld [vmem:[#allocation3 + $0x358] sm:$0xff]
        %v525 = vld [vmem:[#allocation3 + $0x360] sm:$0xff]
        %v526 = vld [vmem:[#allocation3 + $0x368] sm:$0xff]
        %v527 = vld [vmem:[#allocation3 + $0x370] sm:$0xff]
        %v528 = vld [vmem:[#allocation3 + $0x378] sm:$0xff]
        %v529 = vld [vmem:[#allocation3 + $0x380] sm:$0xff]
        %v530 = vld [vmem:[#allocation3 + $0x388] sm:$0xff]
        %v531 = vld [vmem:[#allocation3 + $0x390] sm:$0xff]
        %v532 = vld [vmem:[#allocation3 + $0x398] sm:$0xff]
        %v533 = vld [vmem:[#allocation3 + $0x3a0] sm:$0xff]
        %v534 = vld [vmem:[#allocation3 + $0x3a8] sm:$0xff]
        %v535 = vld [vmem:[#allocation3 + $0x3b0] sm:$0xff]
        %v536 = vld [vmem:[#allocation3 + $0x3b8] sm:$0xff]
        %v537 = vld [vmem:[#allocation3 + $0x3c0] sm:$0xff]
        %v538 = vld [vmem:[#allocation3 + $0x3c8] sm:$0xff]
        %v539 = vld [vmem:[#allocation3 + $0x3d0] sm:$0xff]
        %v540 = vld [vmem:[#allocation3 + $0x3d8] sm:$0xff]
        %v541 = vld [vmem:[#allocation3 + $0x3e0] sm:$0xff]
        %v542 = vld [vmem:[#allocation3 + $0x3e8] sm:$0xff]
        %v543 = vld [vmem:[#allocation3 + $0x3f0] sm:$0xff]
        %v544 = vld [vmem:[#allocation3 + $0x3f8] sm:$0xff]
        %v545 = vld [vmem:[%s241] sm:$0xff]
        %v546 = vld [vmem:[%s241 + $0x8] sm:$0xff]
        %v547 = vld [vmem:[%s241 + $0x10] sm:$0xff]
        %v548 = vld [vmem:[%s241 + $0x18] sm:$0xff]
        %v549 = vld [vmem:[%s241 + $0x20] sm:$0xff]
        %v550 = vld [vmem:[%s241 + $0x28] sm:$0xff]
        %v551 = vld [vmem:[%s241 + $0x30] sm:$0xff]
        %v552 = vld [vmem:[%s241 + $0x38] sm:$0xff]
        %v553 = vld [vmem:[%s241 + $0x40] sm:$0xff]
        %v554 = vld [vmem:[%s241 + $0x48] sm:$0xff]
        %v555 = vld [vmem:[%s241 + $0x50] sm:$0xff]
        %v556 = vld [vmem:[%s241 + $0x58] sm:$0xff]
        %v557 = vld [vmem:[%s241 + $0x60] sm:$0xff]
        %v558 = vld [vmem:[%s241 + $0x68] sm:$0xff]
        %v559 = vld [vmem:[%s241 + $0x70] sm:$0xff]
        %v560 = vld [vmem:[%s241 + $0x78] sm:$0xff]
        %v561 = vld [vmem:[%s241 + $0x80] sm:$0xff]
        %v562 = vld [vmem:[%s241 + $0x88] sm:$0xff]
        %v563 = vld [vmem:[%s241 + $0x90] sm:$0xff]
        %v564 = vld [vmem:[%s241 + $0x98] sm:$0xff]
        %v565 = vld [vmem:[%s241 + $0xa0] sm:$0xff]
        %v566 = vld [vmem:[%s241 + $0xa8] sm:$0xff]
        %v567 = vld [vmem:[%s241 + $0xb0] sm:$0xff]
        %v568 = vld [vmem:[%s241 + $0xb8] sm:$0xff]
        %v569 = vld [vmem:[%s241 + $0xc0] sm:$0xff]
        %v570 = vld [vmem:[%s241 + $0xc8] sm:$0xff]
        %v571 = vld [vmem:[%s241 + $0xd0] sm:$0xff]
        %v572 = vld [vmem:[%s241 + $0xd8] sm:$0xff]
        %v573 = vld [vmem:[%s241 + $0xe0] sm:$0xff]
        %v574 = vld [vmem:[%s241 + $0xe8] sm:$0xff]
        %v575 = vld [vmem:[%s241 + $0xf0] sm:$0xff]
        %v576 = vld [vmem:[%s241 + $0xf8] sm:$0xff]
        %v577 = vld [vmem:[%s241 + $0x100] sm:$0xff]
        %v578 = vld [vmem:[%s241 + $0x108] sm:$0xff]
        %v579 = vld [vmem:[%s241 + $0x110] sm:$0xff]
        %v580 = vld [vmem:[%s241 + $0x118] sm:$0xff]
        %v581 = vld [vmem:[%s241 + $0x120] sm:$0xff]
        %v582 = vld [vmem:[%s241 + $0x128] sm:$0xff]
        %v583 = vld [vmem:[%s241 + $0x130] sm:$0xff]
        %v584 = vld [vmem:[%s241 + $0x138] sm:$0xff]
        %v585 = vld [vmem:[%s241 + $0x140] sm:$0xff]
        %v586 = vld [vmem:[%s241 + $0x148] sm:$0xff]
        %v587 = vld [vmem:[%s241 + $0x150] sm:$0xff]
        %v588 = vld [vmem:[%s241 + $0x158] sm:$0xff]
        %v589 = vld [vmem:[%s241 + $0x160] sm:$0xff]
        %v590 = vld [vmem:[%s241 + $0x168] sm:$0xff]
        %v591 = vld [vmem:[%s241 + $0x170] sm:$0xff]
        %v592 = vld [vmem:[%s241 + $0x178] sm:$0xff]
        %v593 = vld [vmem:[%s241 + $0x180] sm:$0xff]
        %v594 = vld [vmem:[%s241 + $0x188] sm:$0xff]
        %v595 = vld [vmem:[%s241 + $0x190] sm:$0xff]
        %v596 = vld [vmem:[%s241 + $0x198] sm:$0xff]
        %v597 = vld [vmem:[%s241 + $0x1a0] sm:$0xff]
        %v598 = vld [vmem:[%s241 + $0x1a8] sm:$0xff]
        %v599 = vld [vmem:[%s241 + $0x1b0] sm:$0xff]
        %v600 = vld [vmem:[%s241 + $0x1b8] sm:$0xff]
        %v601 = vld [vmem:[%s241 + $0x1c0] sm:$0xff]
        %v602 = vld [vmem:[%s241 + $0x1c8] sm:$0xff]
        %v603 = vld [vmem:[%s241 + $0x1d0] sm:$0xff]
        %v604 = vld [vmem:[%s241 + $0x1d8] sm:$0xff]
        %v605 = vld [vmem:[%s241 + $0x1e0] sm:$0xff]
        %v606 = vld [vmem:[%s241 + $0x1e8] sm:$0xff]
        %v607 = vld [vmem:[%s241 + $0x1f0] sm:$0xff]
        %v608 = vld [vmem:[%s241 + $0x1f8] sm:$0xff]
        %v609 = vld [vmem:[%s241 + $0x200] sm:$0xff]
        %v610 = vld [vmem:[%s241 + $0x208] sm:$0xff]
        %v611 = vld [vmem:[%s241 + $0x210] sm:$0xff]
        %v612 = vld [vmem:[%s241 + $0x218] sm:$0xff]
        %v613 = vld [vmem:[%s241 + $0x220] sm:$0xff]
        %v614 = vld [vmem:[%s241 + $0x228] sm:$0xff]
        %v615 = vld [vmem:[%s241 + $0x230] sm:$0xff]
        %v616 = vld [vmem:[%s241 + $0x238] sm:$0xff]
        %v617 = vld [vmem:[%s241 + $0x240] sm:$0xff]
        %v618 = vld [vmem:[%s241 + $0x248] sm:$0xff]
        %v619 = vld [vmem:[%s241 + $0x250] sm:$0xff]
        %v620 = vld [vmem:[%s241 + $0x258] sm:$0xff]
        %v621 = vld [vmem:[%s241 + $0x260] sm:$0xff]
        %v622 = vld [vmem:[%s241 + $0x268] sm:$0xff]
        %v623 = vld [vmem:[%s241 + $0x270] sm:$0xff]
        %v624 = vld [vmem:[%s241 + $0x278] sm:$0xff]
        %v625 = vld [vmem:[%s241 + $0x280] sm:$0xff]
        %v626 = vld [vmem:[%s241 + $0x288] sm:$0xff]
        %v627 = vld [vmem:[%s241 + $0x290] sm:$0xff]
        %v628 = vld [vmem:[%s241 + $0x298] sm:$0xff]
        %v629 = vld [vmem:[%s241 + $0x2a0] sm:$0xff]
        %v630 = vld [vmem:[%s241 + $0x2a8] sm:$0xff]
        %v631 = vld [vmem:[%s241 + $0x2b0] sm:$0xff]
        %v632 = vld [vmem:[%s241 + $0x2b8] sm:$0xff]
        %v633 = vld [vmem:[%s241 + $0x2c0] sm:$0xff]
        %v634 = vld [vmem:[%s241 + $0x2c8] sm:$0xff]
        %v635 = vld [vmem:[%s241 + $0x2d0] sm:$0xff]
        %v636 = vld [vmem:[%s241 + $0x2d8] sm:$0xff]
        %v637 = vld [vmem:[%s241 + $0x2e0] sm:$0xff]
        %v638 = vld [vmem:[%s241 + $0x2e8] sm:$0xff]
        %v639 = vld [vmem:[%s241 + $0x2f0] sm:$0xff]
        %v640 = vld [vmem:[%s241 + $0x2f8] sm:$0xff]
        %v641 = vld [vmem:[%s241 + $0x300] sm:$0xff]
        %v642 = vld [vmem:[%s241 + $0x308] sm:$0xff]
        %v643 = vld [vmem:[%s241 + $0x310] sm:$0xff]
        %v644 = vld [vmem:[%s241 + $0x318] sm:$0xff]
        %v645 = vld [vmem:[%s241 + $0x320] sm:$0xff]
        %v646 = vld [vmem:[%s241 + $0x328] sm:$0xff]
        %v647 = vld [vmem:[%s241 + $0x330] sm:$0xff]
        %v648 = vld [vmem:[%s241 + $0x338] sm:$0xff]
        %v649 = vld [vmem:[%s241 + $0x340] sm:$0xff]
        %v650 = vld [vmem:[%s241 + $0x348] sm:$0xff]
        %v651 = vld [vmem:[%s241 + $0x350] sm:$0xff]
        %v652 = vld [vmem:[%s241 + $0x358] sm:$0xff]
        %v653 = vld [vmem:[%s241 + $0x360] sm:$0xff]
        %v654 = vld [vmem:[%s241 + $0x368] sm:$0xff]
        %v655 = vld [vmem:[%s241 + $0x370] sm:$0xff]
        %v656 = vld [vmem:[%s241 + $0x378] sm:$0xff]
        %v657 = vld [vmem:[%s241 + $0x380] sm:$0xff]
        %v658 = vld [vmem:[%s241 + $0x388] sm:$0xff]
        %v659 = vld [vmem:[%s241 + $0x390] sm:$0xff]
        %v660 = vld [vmem:[%s241 + $0x398] sm:$0xff]
        %v661 = vld [vmem:[%s241 + $0x3a0] sm:$0xff]
        %v662 = vld [vmem:[%s241 + $0x3a8] sm:$0xff]
        %v663 = vld [vmem:[%s241 + $0x3b0] sm:$0xff]
        %v664 = vld [vmem:[%s241 + $0x3b8] sm:$0xff]
        %v665 = vld [vmem:[%s241 + $0x3c0] sm:$0xff]
        %v666 = vld [vmem:[%s241 + $0x3c8] sm:$0xff]
        %v667 = vld [vmem:[%s241 + $0x3d0] sm:$0xff]
        %v668 = vld [vmem:[%s241 + $0x3d8] sm:$0xff]
        %v669 = vld [vmem:[%s241 + $0x3e0] sm:$0xff]
        %v670 = vld [vmem:[%s241 + $0x3e8] sm:$0xff]
        %v671 = vld [vmem:[%s241 + $0x3f0] sm:$0xff]
        %v672 = vld [vmem:[%s241 + $0x3f8] sm:$0xff]
        %673 = vmatprep.subr.mxu0 %v546
        %674 = vmatpush1.msra.mxu0 %v545
        %675 = vmatprep.subr.mxu0 %v548
        %676 = vmatpush1.msra.mxu0 %v547
        %677 = vmatprep.subr.mxu0 %v550
        %678 = vmatpush1.msra.mxu0 %v549
        %679 = vmatprep.subr.mxu0 %v552
        %680 = vmatpush1.msra.mxu0 %v551
        %681 = vmatprep.subr.mxu0 %v554
        %682 = vmatpush1.msra.mxu0 %v553
        %683 = vmatprep.subr.mxu0 %v556
        %684 = vmatpush1.msra.mxu0 %v555
        %685 = vmatprep.subr.mxu0 %v558
        %686 = vmatpush1.msra.mxu0 %v557
        %687 = vmatprep.subr.mxu0 %v560
        %688 = vmatpush1.msra.mxu0 %v559
        %689 = vmatprep.subr.mxu0 %v562
        %690 = vmatpush1.msra.mxu0 %v561
        %691 = vmatprep.subr.mxu0 %v564
        %692 = vmatpush1.msra.mxu0 %v563
        %693 = vmatprep.subr.mxu0 %v566
        %694 = vmatpush1.msra.mxu0 %v565
        %695 = vmatprep.subr.mxu0 %v568
        %696 = vmatpush1.msra.mxu0 %v567
        %697 = vmatprep.subr.mxu0 %v570
        %698 = vmatpush1.msra.mxu0 %v569
        %699 = vmatprep.subr.mxu0 %v572
        %700 = vmatpush1.msra.mxu0 %v571
        %701 = vmatprep.subr.mxu0 %v574
        %702 = vmatpush1.msra.mxu0 %v573
        %703 = vmatprep.subr.mxu0 %v576
        %704 = vmatpush1.msra.mxu0 %v575
        %705 = vmatprep.subr.mxu0 %v578
        %706 = vmatpush1.msra.mxu0 %v577
        %707 = vmatprep.subr.mxu0 %v580
        %708 = vmatpush1.msra.mxu0 %v579
        %709 = vmatprep.subr.mxu0 %v582
        %710 = vmatpush1.msra.mxu0 %v581
        %711 = vmatprep.subr.mxu0 %v584
        %712 = vmatpush1.msra.mxu0 %v583
        %713 = vmatprep.subr.mxu0 %v586
        %714 = vmatpush1.msra.mxu0 %v585
        %715 = vmatprep.subr.mxu0 %v588
        %716 = vmatpush1.msra.mxu0 %v587
        %717 = vmatprep.subr.mxu0 %v590
        %718 = vmatpush1.msra.mxu0 %v589
        %719 = vmatprep.subr.mxu0 %v592
        %720 = vmatpush1.msra.mxu0 %v591
        %721 = vmatprep.subr.mxu0 %v594
        %722 = vmatpush1.msra.mxu0 %v593
        %723 = vmatprep.subr.mxu0 %v596
        %724 = vmatpush1.msra.mxu0 %v595
        %725 = vmatprep.subr.mxu0 %v598
        %726 = vmatpush1.msra.mxu0 %v597
        %727 = vmatprep.subr.mxu0 %v600
        %728 = vmatpush1.msra.mxu0 %v599
        %729 = vmatprep.subr.mxu0 %v602
        %730 = vmatpush1.msra.mxu0 %v601
        %731 = vmatprep.subr.mxu0 %v604
        %732 = vmatpush1.msra.mxu0 %v603
        %733 = vmatprep.subr.mxu0 %v606
        %734 = vmatpush1.msra.mxu0 %v605
        %735 = vmatprep.subr.mxu0 %v608
        %736 = vmatpush1.msra.mxu0 %v607
        %737 = vmatprep.mubr.f32.mxu0 %v418
        %738 = vmatmul.mubr.f32.gmra.mrb[0].mxu0 %v417
        %v739 = vpop.f32.mrb[0].mxu0
        %v740 = vadd.f32 0.0, %v739
        %v741 = vpop.f32.mrb[0].mxu0
        %v742 = vadd.f32 0.0, %v741
        %743 = vmatprep.mubr.f32.mxu0 %v422
        %744 = vmatmul.mubr.f32.gmra.mrb[0].mxu0 %v421
        %v745 = vpop.f32.mrb[0].mxu0
        %v746 = vadd.f32 0.0, %v745
        %v747 = vpop.f32.mrb[0].mxu0
        %v748 = vadd.f32 0.0, %v747
        %749 = vmatprep.mubr.f32.mxu0 %v426
        %750 = vmatmul.mubr.f32.gmra.mrb[0].mxu0 %v425
        %v751 = vpop.f32.mrb[0].mxu0
        %v752 = vadd.f32 0.0, %v751
        %v753 = vpop.f32.mrb[0].mxu0
        %v754 = vadd.f32 0.0, %v753
        %755 = vmatprep.mubr.f32.mxu0 %v430
        %756 = vmatmul.mubr.f32.gmra.mrb[0].mxu0 %v429
        %v757 = vpop.f32.mrb[0].mxu0
        %v758 = vadd.f32 0.0, %v757
        %v759 = vpop.f32.mrb[0].mxu0
        %v760 = vadd.f32 0.0, %v759
        %761 = vmatprep.mubr.f32.mxu0 %v434
        %762 = vmatmul.mubr.f32.gmra.mrb[0].mxu0 %v433
        %v763 = vpop.f32.mrb[0].mxu0
        %v764 = vadd.f32 0.0, %v763
        %v765 = vpop.f32.mrb[0].mxu0
        %v766 = vadd.f32 0.0, %v765
        %767 = vmatprep.mubr.f32.mxu0 %v438
        %768 = vmatmul.mubr.f32.gmra.mrb[0].mxu0 %v437
        %v769 = vpop.f32.mrb[0].mxu0
        %v770 = vadd.f32 0.0, %v769
        %v771 = vpop.f32.mrb[0].mxu0
        %v772 = vadd.f32 0.0, %v771
        %773 = vmatprep.mubr.f32.mxu0 %v442
        %774 = vmatmul.mubr.f32.gmra.mrb[0].mxu0 %v441
        %v775 = vpop.f32.mrb[0].mxu0
        %v776 = vadd.f32 0.0, %v775
        %v777 = vpop.f32.mrb[0].mxu0
        %v778 = vadd.f32 0.0, %v777
        %779 = vmatprep.mubr.f32.mxu0 %v446
        %780 = vmatmul.mubr.f32.gmra.mrb[0].mxu0 %v445
        %v781 = vpop.f32.mrb[0].mxu0
        %v782 = vadd.f32 0.0, %v781
        %v783 = vpop.f32.mrb[0].mxu0
        %v784 = vadd.f32 0.0, %v783
        %785 = vmatprep.mubr.f32.mxu0 %v450
        %786 = vmatmul.mubr.f32.gmra.mrb[0].mxu0 %v449
        %v787 = vpop.f32.mrb[0].mxu0
        %v788 = vadd.f32 0.0, %v787
        %v789 = vpop.f32.mrb[0].mxu0
        %v790 = vadd.f32 0.0, %v789
        %791 = vmatprep.mubr.f32.mxu0 %v454
        %792 = vmatmul.mubr.f32.gmra.mrb[0].mxu0 %v453
        %v793 = vpop.f32.mrb[0].mxu0
        %v794 = vadd.f32 0.0, %v793
        %v795 = vpop.f32.mrb[0].mxu0
        %v796 = vadd.f32 0.0, %v795
        %797 = vmatprep.mubr.f32.mxu0 %v458
        %798 = vmatmul.mubr.f32.gmra.mrb[0].mxu0 %v457
        %v799 = vpop.f32.mrb[0].mxu0
        %v800 = vadd.f32 0.0, %v799
        %v801 = vpop.f32.mrb[0].mxu0
        %v802 = vadd.f32 0.0, %v801
        %803 = vmatprep.mubr.f32.mxu0 %v462
        %804 = vmatmul.mubr.f32.gmra.mrb[0].mxu0 %v461
        %v805 = vpop.f32.mrb[0].mxu0
        %v806 = vadd.f32 0.0, %v805
        %v807 = vpop.f32.mrb[0].mxu0
        %v808 = vadd.f32 0.0, %v807
        %809 = vmatprep.mubr.f32.mxu0 %v466
        %810 = vmatmul.mubr.f32.gmra.mrb[0].mxu0 %v465
        %v811 = vpop.f32.mrb[0].mxu0
        %v812 = vadd.f32 0.0, %v811
        %v813 = vpop.f32.mrb[0].mxu0
        %v814 = vadd.f32 0.0, %v813
        %815 = vmatprep.mubr.f32.mxu0 %v470
        %816 = vmatmul.mubr.f32.gmra.mrb[0].mxu0 %v469
        %v817 = vpop.f32.mrb[0].mxu0
        %v818 = vadd.f32 0.0, %v817
        %v819 = vpop.f32.mrb[0].mxu0
        %v820 = vadd.f32 0.0, %v819
        %821 = vmatprep.mubr.f32.mxu0 %v474
        %822 = vmatmul.mubr.f32.gmra.mrb[0].mxu0 %v473
        %v823 = vpop.f32.mrb[0].mxu0
        %v824 = vadd.f32 0.0, %v823
        %v825 = vpop.f32.mrb[0].mxu0
        %v826 = vadd.f32 0.0, %v825
        %827 = vmatprep.mubr.f32.mxu0 %v478
        %828 = vmatmul.mubr.f32.gmra.mrb[0].mxu0 %v477
        %v829 = vpop.f32.mrb[0].mxu0
        %v830 = vadd.f32 0.0, %v829
        %v831 = vpop.f32.mrb[0].mxu0
        %v832 = vadd.f32 0.0, %v831
        %833 = vmatprep.mubr.f32.mxu0 %v482
        %834 = vmatmul.mubr.f32.gmra.mrb[0].mxu0 %v481
        %v835 = vpop.f32.mrb[0].mxu0
        %v836 = vadd.f32 0.0, %v835
        %v837 = vpop.f32.mrb[0].mxu0
        %v838 = vadd.f32 0.0, %v837
        %839 = vmatprep.mubr.f32.mxu0 %v486
        %840 = vmatmul.mubr.f32.gmra.mrb[0].mxu0 %v485
        %v841 = vpop.f32.mrb[0].mxu0
        %v842 = vadd.f32 0.0, %v841
        %v843 = vpop.f32.mrb[0].mxu0
        %v844 = vadd.f32 0.0, %v843
        %845 = vmatprep.mubr.f32.mxu0 %v490
        %846 = vmatmul.mubr.f32.gmra.mrb[0].mxu0 %v489
        %v847 = vpop.f32.mrb[0].mxu0
        %v848 = vadd.f32 0.0, %v847
        %v849 = vpop.f32.mrb[0].mxu0
        %v850 = vadd.f32 0.0, %v849
        %851 = vmatprep.mubr.f32.mxu0 %v494
        %852 = vmatmul.mubr.f32.gmra.mrb[0].mxu0 %v493
        %v853 = vpop.f32.mrb[0].mxu0
        %v854 = vadd.f32 0.0, %v853
        %v855 = vpop.f32.mrb[0].mxu0
        %v856 = vadd.f32 0.0, %v855
        %857 = vmatprep.mubr.f32.mxu0 %v498
        %858 = vmatmul.mubr.f32.gmra.mrb[0].mxu0 %v497
        %v859 = vpop.f32.mrb[0].mxu0
        %v860 = vadd.f32 0.0, %v859
        %v861 = vpop.f32.mrb[0].mxu0
        %v862 = vadd.f32 0.0, %v861
        %863 = vmatprep.mubr.f32.mxu0 %v502
        %864 = vmatmul.mubr.f32.gmra.mrb[0].mxu0 %v501
        %v865 = vpop.f32.mrb[0].mxu0
        %v866 = vadd.f32 0.0, %v865
        %v867 = vpop.f32.mrb[0].mxu0
        %v868 = vadd.f32 0.0, %v867
        %869 = vmatprep.mubr.f32.mxu0 %v506
        %870 = vmatmul.mubr.f32.gmra.mrb[0].mxu0 %v505
        %v871 = vpop.f32.mrb[0].mxu0
        %v872 = vadd.f32 0.0, %v871
        %v873 = vpop.f32.mrb[0].mxu0
        %v874 = vadd.f32 0.0, %v873
        %875 = vmatprep.mubr.f32.mxu0 %v510
        %876 = vmatmul.mubr.f32.gmra.mrb[0].mxu0 %v509
        %v877 = vpop.f32.mrb[0].mxu0
        %v878 = vadd.f32 0.0, %v877
        %v879 = vpop.f32.mrb[0].mxu0
        %v880 = vadd.f32 0.0, %v879
        %881 = vmatprep.mubr.f32.mxu0 %v514
        %882 = vmatmul.mubr.f32.gmra.mrb[0].mxu0 %v513
        %v883 = vpop.f32.mrb[0].mxu0
        %v884 = vadd.f32 0.0, %v883
        %v885 = vpop.f32.mrb[0].mxu0
        %v886 = vadd.f32 0.0, %v885
        %887 = vmatprep.mubr.f32.mxu0 %v518
        %888 = vmatmul.mubr.f32.gmra.mrb[0].mxu0 %v517
        %v889 = vpop.f32.mrb[0].mxu0
        %v890 = vadd.f32 0.0, %v889
        %v891 = vpop.f32.mrb[0].mxu0
        %v892 = vadd.f32 0.0, %v891
        %893 = vmatprep.mubr.f32.mxu0 %v522
        %894 = vmatmul.mubr.f32.gmra.mrb[0].mxu0 %v521
        %v895 = vpop.f32.mrb[0].mxu0
        %v896 = vadd.f32 0.0, %v895
        %v897 = vpop.f32.mrb[0].mxu0
        %v898 = vadd.f32 0.0, %v897
        %899 = vmatprep.mubr.f32.mxu0 %v526
        %900 = vmatmul.mubr.f32.gmra.mrb[0].mxu0 %v525
        %v901 = vpop.f32.mrb[0].mxu0
        %v902 = vadd.f32 0.0, %v901
        %v903 = vpop.f32.mrb[0].mxu0
        %v904 = vadd.f32 0.0, %v903
        %905 = vmatprep.mubr.f32.mxu0 %v530
        %906 = vmatmul.mubr.f32.gmra.mrb[0].mxu0 %v529
        %v907 = vpop.f32.mrb[0].mxu0
        %v908 = vadd.f32 0.0, %v907
        %v909 = vpop.f32.mrb[0].mxu0
        %v910 = vadd.f32 0.0, %v909
        %911 = vmatprep.mubr.f32.mxu0 %v534
        %912 = vmatmul.mubr.f32.gmra.mrb[0].mxu0 %v533
        %v913 = vpop.f32.mrb[0].mxu0
        %v914 = vadd.f32 0.0, %v913
        %v915 = vpop.f32.mrb[0].mxu0
        %v916 = vadd.f32 0.0, %v915
        %917 = vmatprep.mubr.f32.mxu0 %v538
        %918 = vmatmul.mubr.f32.gmra.mrb[0].mxu0 %v537
        %v919 = vpop.f32.mrb[0].mxu0
        %v920 = vadd.f32 0.0, %v919
        %v921 = vpop.f32.mrb[0].mxu0
        %v922 = vadd.f32 0.0, %v921
        %923 = vmatprep.mubr.f32.mxu0 %v542
        %924 = vmatmul.mubr.f32.gmra.mrb[0].mxu0 %v541
        %v925 = vpop.f32.mrb[0].mxu0
        %v926 = vadd.f32 0.0, %v925
        %v927 = vpop.f32.mrb[0].mxu0
        %v928 = vadd.f32 0.0, %v927
        %929 = vdwg.mxu0
        %930 = vmatprep.subr.mxu0 %v610
        %931 = vmatpush1.msra.mxu0 %v609
        %932 = vmatprep.subr.mxu0 %v612
        %933 = vmatpush1.msra.mxu0 %v611
        %934 = vmatprep.subr.mxu0 %v614
        %935 = vmatpush1.msra.mxu0 %v613
        %936 = vmatprep.subr.mxu0 %v616
        %937 = vmatpush1.msra.mxu0 %v615
        %938 = vmatprep.subr.mxu0 %v618
        %939 = vmatpush1.msra.mxu0 %v617
        %940 = vmatprep.subr.mxu0 %v620
        %941 = vmatpush1.msra.mxu0 %v619
        %942 = vmatprep.subr.mxu0 %v622
        %943 = vmatpush1.msra.mxu0 %v621
        %944 = vmatprep.subr.mxu0 %v624
        %945 = vmatpush1.msra.mxu0 %v623
        %946 = vmatprep.subr.mxu0 %v626
        %947 = vmatpush1.msra.mxu0 %v625
        %948 = vmatprep.subr.mxu0 %v628
        %949 = vmatpush1.msra.mxu0 %v627
        %950 = vmatprep.subr.mxu0 %v630
        %951 = vmatpush1.msra.mxu0 %v629
        %952 = vmatprep.subr.mxu0 %v632
        %953 = vmatpush1.msra.mxu0 %v631
        %954 = vmatprep.subr.mxu0 %v634
        %955 = vmatpush1.msra.mxu0 %v633
        %956 = vmatprep.subr.mxu0 %v636
        %957 = vmatpush1.msra.mxu0 %v635
        %958 = vmatprep.subr.mxu0 %v638
        %959 = vmatpush1.msra.mxu0 %v637
        %960 = vmatprep.subr.mxu0 %v640
        %961 = vmatpush1.msra.mxu0 %v639
        %962 = vmatprep.subr.mxu0 %v642
        %963 = vmatpush1.msra.mxu0 %v641
        %964 = vmatprep.subr.mxu0 %v644
        %965 = vmatpush1.msra.mxu0 %v643
        %966 = vmatprep.subr.mxu0 %v646
        %967 = vmatpush1.msra.mxu0 %v645
        %968 = vmatprep.subr.mxu0 %v648
        %969 = vmatpush1.msra.mxu0 %v647
        %970 = vmatprep.subr.mxu0 %v650
        %971 = vmatpush1.msra.mxu0 %v649
        %972 = vmatprep.subr.mxu0 %v652
        %973 = vmatpush1.msra.mxu0 %v651
        %974 = vmatprep.subr.mxu0 %v654
        %975 = vmatpush1.msra.mxu0 %v653
        %976 = vmatprep.subr.mxu0 %v656
        %977 = vmatpush1.msra.mxu0 %v655
        %978 = vmatprep.subr.mxu0 %v658
        %979 = vmatpush1.msra.mxu0 %v657
        %980 = vmatprep.subr.mxu0 %v660
        %981 = vmatpush1.msra.mxu0 %v659
        %982 = vmatprep.subr.mxu0 %v662
        %983 = vmatpush1.msra.mxu0 %v661
        %984 = vmatprep.subr.mxu0 %v664
        %985 = vmatpush1.msra.mxu0 %v663
        %986 = vmatprep.subr.mxu0 %v666
        %987 = vmatpush1.msra.mxu0 %v665
        %988 = vmatprep.subr.mxu0 %v668
        %989 = vmatpush1.msra.mxu0 %v667
        %990 = vmatprep.subr.mxu0 %v670
        %991 = vmatpush1.msra.mxu0 %v669
        %992 = vmatprep.subr.mxu0 %v672
        %993 = vmatpush1.msra.mxu0 %v671
        %994 = vmatprep.mubr.f32.mxu0 %v420
        %995 = vmatmul.mubr.f32.gmra.mrb[0].mxu0 %v419
        %v996 = vpop.f32.mrb[0].mxu0
        %v997 = vadd.f32 %v740, %v996
        %v998 = vpop.f32.mrb[0].mxu0
        %v999 = vadd.f32 %v742, %v998
        %1000 = vmatprep.mubr.f32.mxu0 %v424
        %1001 = vmatmul.mubr.f32.gmra.mrb[0].mxu0 %v423
        %v1002 = vpop.f32.mrb[0].mxu0
        %v1003 = vadd.f32 %v746, %v1002
        %v1004 = vpop.f32.mrb[0].mxu0
        %v1005 = vadd.f32 %v748, %v1004
        %1006 = vmatprep.mubr.f32.mxu0 %v428
        %1007 = vmatmul.mubr.f32.gmra.mrb[0].mxu0 %v427
        %v1008 = vpop.f32.mrb[0].mxu0
        %v1009 = vadd.f32 %v752, %v1008
        %v1010 = vpop.f32.mrb[0].mxu0
        %v1011 = vadd.f32 %v754, %v1010
        %1012 = vmatprep.mubr.f32.mxu0 %v432
        %1013 = vmatmul.mubr.f32.gmra.mrb[0].mxu0 %v431
        %v1014 = vpop.f32.mrb[0].mxu0
        %v1015 = vadd.f32 %v758, %v1014
        %v1016 = vpop.f32.mrb[0].mxu0
        %v1017 = vadd.f32 %v760, %v1016
        %1018 = vmatprep.mubr.f32.mxu0 %v436
        %1019 = vmatmul.mubr.f32.gmra.mrb[0].mxu0 %v435
        %v1020 = vpop.f32.mrb[0].mxu0
        %v1021 = vadd.f32 %v764, %v1020
        %v1022 = vpop.f32.mrb[0].mxu0
        %v1023 = vadd.f32 %v766, %v1022
        %1024 = vmatprep.mubr.f32.mxu0 %v440
        %1025 = vmatmul.mubr.f32.gmra.mrb[0].mxu0 %v439
        %v1026 = vpop.f32.mrb[0].mxu0
        %v1027 = vadd.f32 %v770, %v1026
        %v1028 = vpop.f32.mrb[0].mxu0
        %v1029 = vadd.f32 %v772, %v1028
        %1030 = vmatprep.mubr.f32.mxu0 %v444
        %1031 = vmatmul.mubr.f32.gmra.mrb[0].mxu0 %v443
        %v1032 = vpop.f32.mrb[0].mxu0
        %v1033 = vadd.f32 %v776, %v1032
        %v1034 = vpop.f32.mrb[0].mxu0
        %v1035 = vadd.f32 %v778, %v1034
        %1036 = vmatprep.mubr.f32.mxu0 %v448
        %1037 = vmatmul.mubr.f32.gmra.mrb[0].mxu0 %v447
        %v1038 = vpop.f32.mrb[0].mxu0
        %v1039 = vadd.f32 %v782, %v1038
        %v1040 = vpop.f32.mrb[0].mxu0
        %v1041 = vadd.f32 %v784, %v1040
        %1042 = vmatprep.mubr.f32.mxu0 %v452
        %1043 = vmatmul.mubr.f32.gmra.mrb[0].mxu0 %v451
        %v1044 = vpop.f32.mrb[0].mxu0
        %v1045 = vadd.f32 %v788, %v1044
        %v1046 = vpop.f32.mrb[0].mxu0
        %v1047 = vadd.f32 %v790, %v1046
        %1048 = vmatprep.mubr.f32.mxu0 %v456
        %1049 = vmatmul.mubr.f32.gmra.mrb[0].mxu0 %v455
        %v1050 = vpop.f32.mrb[0].mxu0
        %v1051 = vadd.f32 %v794, %v1050
        %v1052 = vpop.f32.mrb[0].mxu0
        %v1053 = vadd.f32 %v796, %v1052
        %1054 = vmatprep.mubr.f32.mxu0 %v460
        %1055 = vmatmul.mubr.f32.gmra.mrb[0].mxu0 %v459
        %v1056 = vpop.f32.mrb[0].mxu0
        %v1057 = vadd.f32 %v800, %v1056
        %v1058 = vpop.f32.mrb[0].mxu0
        %v1059 = vadd.f32 %v802, %v1058
        %1060 = vmatprep.mubr.f32.mxu0 %v464
        %1061 = vmatmul.mubr.f32.gmra.mrb[0].mxu0 %v463
        %v1062 = vpop.f32.mrb[0].mxu0
        %v1063 = vadd.f32 %v806, %v1062
        %v1064 = vpop.f32.mrb[0].mxu0
        %v1065 = vadd.f32 %v808, %v1064
        %1066 = vmatprep.mubr.f32.mxu0 %v468
        %1067 = vmatmul.mubr.f32.gmra.mrb[0].mxu0 %v467
        %v1068 = vpop.f32.mrb[0].mxu0
        %v1069 = vadd.f32 %v812, %v1068
        %v1070 = vpop.f32.mrb[0].mxu0
        %v1071 = vadd.f32 %v814, %v1070
        %1072 = vmatprep.mubr.f32.mxu0 %v472
        %1073 = vmatmul.mubr.f32.gmra.mrb[0].mxu0 %v471
        %v1074 = vpop.f32.mrb[0].mxu0
        %v1075 = vadd.f32 %v818, %v1074
        %v1076 = vpop.f32.mrb[0].mxu0
        %v1077 = vadd.f32 %v820, %v1076
        %1078 = vmatprep.mubr.f32.mxu0 %v476
        %1079 = vmatmul.mubr.f32.gmra.mrb[0].mxu0 %v475
        %v1080 = vpop.f32.mrb[0].mxu0
        %v1081 = vadd.f32 %v824, %v1080
        %v1082 = vpop.f32.mrb[0].mxu0
        %v1083 = vadd.f32 %v826, %v1082
        %1084 = vmatprep.mubr.f32.mxu0 %v480
        %1085 = vmatmul.mubr.f32.gmra.mrb[0].mxu0 %v479
        %v1086 = vpop.f32.mrb[0].mxu0
        %v1087 = vadd.f32 %v830, %v1086
        %v1088 = vpop.f32.mrb[0].mxu0
        %v1089 = vadd.f32 %v832, %v1088
        %1090 = vmatprep.mubr.f32.mxu0 %v484
        %1091 = vmatmul.mubr.f32.gmra.mrb[0].mxu0 %v483
        %v1092 = vpop.f32.mrb[0].mxu0
        %v1093 = vadd.f32 %v836, %v1092
        %v1094 = vpop.f32.mrb[0].mxu0
        %v1095 = vadd.f32 %v838, %v1094
        %1096 = vmatprep.mubr.f32.mxu0 %v488
        %1097 = vmatmul.mubr.f32.gmra.mrb[0].mxu0 %v487
        %v1098 = vpop.f32.mrb[0].mxu0
        %v1099 = vadd.f32 %v842, %v1098
        %v1100 = vpop.f32.mrb[0].mxu0
        %v1101 = vadd.f32 %v844, %v1100
        %1102 = vmatprep.mubr.f32.mxu0 %v492
        %1103 = vmatmul.mubr.f32.gmra.mrb[0].mxu0 %v491
        %v1104 = vpop.f32.mrb[0].mxu0
        %v1105 = vadd.f32 %v848, %v1104
        %v1106 = vpop.f32.mrb[0].mxu0
        %v1107 = vadd.f32 %v850, %v1106
        %1108 = vmatprep.mubr.f32.mxu0 %v496
        %1109 = vmatmul.mubr.f32.gmra.mrb[0].mxu0 %v495
        %v1110 = vpop.f32.mrb[0].mxu0
        %v1111 = vadd.f32 %v854, %v1110
        %v1112 = vpop.f32.mrb[0].mxu0
        %v1113 = vadd.f32 %v856, %v1112
        %1114 = vmatprep.mubr.f32.mxu0 %v500
        %1115 = vmatmul.mubr.f32.gmra.mrb[0].mxu0 %v499
        %v1116 = vpop.f32.mrb[0].mxu0
        %v1117 = vadd.f32 %v860, %v1116
        %v1118 = vpop.f32.mrb[0].mxu0
        %v1119 = vadd.f32 %v862, %v1118
        %1120 = vmatprep.mubr.f32.mxu0 %v504
        %1121 = vmatmul.mubr.f32.gmra.mrb[0].mxu0 %v503
        %v1122 = vpop.f32.mrb[0].mxu0
        %v1123 = vadd.f32 %v866, %v1122
        %v1124 = vpop.f32.mrb[0].mxu0
        %v1125 = vadd.f32 %v868, %v1124
        %1126 = vmatprep.mubr.f32.mxu0 %v508
        %1127 = vmatmul.mubr.f32.gmra.mrb[0].mxu0 %v507
        %v1128 = vpop.f32.mrb[0].mxu0
        %v1129 = vadd.f32 %v872, %v1128
        %v1130 = vpop.f32.mrb[0].mxu0
        %v1131 = vadd.f32 %v874, %v1130
        %1132 = vmatprep.mubr.f32.mxu0 %v512
        %1133 = vmatmul.mubr.f32.gmra.mrb[0].mxu0 %v511
        %v1134 = vpop.f32.mrb[0].mxu0
        %v1135 = vadd.f32 %v878, %v1134
        %v1136 = vpop.f32.mrb[0].mxu0
        %v1137 = vadd.f32 %v880, %v1136
        %1138 = vmatprep.mubr.f32.mxu0 %v516
        %1139 = vmatmul.mubr.f32.gmra.mrb[0].mxu0 %v515
        %v1140 = vpop.f32.mrb[0].mxu0
        %v1141 = vadd.f32 %v884, %v1140
        %v1142 = vpop.f32.mrb[0].mxu0
        %v1143 = vadd.f32 %v886, %v1142
        %1144 = vmatprep.mubr.f32.mxu0 %v520
        %1145 = vmatmul.mubr.f32.gmra.mrb[0].mxu0 %v519
        %v1146 = vpop.f32.mrb[0].mxu0
        %v1147 = vadd.f32 %v890, %v1146
        %v1148 = vpop.f32.mrb[0].mxu0
        %v1149 = vadd.f32 %v892, %v1148
        %1150 = vmatprep.mubr.f32.mxu0 %v524
        %1151 = vmatmul.mubr.f32.gmra.mrb[0].mxu0 %v523
        %v1152 = vpop.f32.mrb[0].mxu0
        %v1153 = vadd.f32 %v896, %v1152
        %v1154 = vpop.f32.mrb[0].mxu0
        %v1155 = vadd.f32 %v898, %v1154
        %1156 = vmatprep.mubr.f32.mxu0 %v528
        %1157 = vmatmul.mubr.f32.gmra.mrb[0].mxu0 %v527
        %v1158 = vpop.f32.mrb[0].mxu0
        %v1159 = vadd.f32 %v902, %v1158
        %v1160 = vpop.f32.mrb[0].mxu0
        %v1161 = vadd.f32 %v904, %v1160
        %1162 = vmatprep.mubr.f32.mxu0 %v532
        %1163 = vmatmul.mubr.f32.gmra.mrb[0].mxu0 %v531
        %v1164 = vpop.f32.mrb[0].mxu0
        %v1165 = vadd.f32 %v908, %v1164
        %v1166 = vpop.f32.mrb[0].mxu0
        %v1167 = vadd.f32 %v910, %v1166
        %1168 = vmatprep.mubr.f32.mxu0 %v536
        %1169 = vmatmul.mubr.f32.gmra.mrb[0].mxu0 %v535
        %v1170 = vpop.f32.mrb[0].mxu0
        %v1171 = vadd.f32 %v914, %v1170
        %v1172 = vpop.f32.mrb[0].mxu0
        %v1173 = vadd.f32 %v916, %v1172
        %1174 = vmatprep.mubr.f32.mxu0 %v540
        %1175 = vmatmul.mubr.f32.gmra.mrb[0].mxu0 %v539
        %v1176 = vpop.f32.mrb[0].mxu0
        %v1177 = vadd.f32 %v920, %v1176
        %v1178 = vpop.f32.mrb[0].mxu0
        %v1179 = vadd.f32 %v922, %v1178
        %1180 = vmatprep.mubr.f32.mxu0 %v544
        %1181 = vmatmul.mubr.f32.gmra.mrb[0].mxu0 %v543
        %v1182 = vpop.f32.mrb[0].mxu0
        %v1183 = vadd.f32 %v926, %v1182
        %v1184 = vpop.f32.mrb[0].mxu0
        %v1185 = vadd.f32 %v928, %v1184
        %1186 = vdwg.mxu0
        %v1187 = vadd.f32 %v353, %v997
        %v1188 = vadd.f32 %v354, %v999
        %v1189 = vadd.f32 %v355, %v1003
        %v1190 = vadd.f32 %v356, %v1005
        %v1191 = vadd.f32 %v357, %v1009
        %v1192 = vadd.f32 %v358, %v1011
        %v1193 = vadd.f32 %v359, %v1015
        %v1194 = vadd.f32 %v360, %v1017
        %v1195 = vadd.f32 %v361, %v1021
        %v1196 = vadd.f32 %v362, %v1023
        %v1197 = vadd.f32 %v363, %v1027
        %v1198 = vadd.f32 %v364, %v1029
        %v1199 = vadd.f32 %v365, %v1033
        %v1200 = vadd.f32 %v366, %v1035
        %v1201 = vadd.f32 %v367, %v1039
        %v1202 = vadd.f32 %v368, %v1041
        %v1203 = vadd.f32 %v369, %v1045
        %v1204 = vadd.f32 %v370, %v1047
        %v1205 = vadd.f32 %v371, %v1051
        %v1206 = vadd.f32 %v372, %v1053
        %v1207 = vadd.f32 %v373, %v1057
        %v1208 = vadd.f32 %v374, %v1059
        %v1209 = vadd.f32 %v375, %v1063
        %v1210 = vadd.f32 %v376, %v1065
        %v1211 = vadd.f32 %v377, %v1069
        %v1212 = vadd.f32 %v378, %v1071
        %v1213 = vadd.f32 %v379, %v1075
        %v1214 = vadd.f32 %v380, %v1077
        %v1215 = vadd.f32 %v381, %v1081
        %v1216 = vadd.f32 %v382, %v1083
        %v1217 = vadd.f32 %v383, %v1087
        %v1218 = vadd.f32 %v384, %v1089
        %v1219 = vadd.f32 %v385, %v1093
        %v1220 = vadd.f32 %v386, %v1095
        %v1221 = vadd.f32 %v387, %v1099
        %v1222 = vadd.f32 %v388, %v1101
        %v1223 = vadd.f32 %v389, %v1105
        %v1224 = vadd.f32 %v390, %v1107
        %v1225 = vadd.f32 %v391, %v1111
        %v1226 = vadd.f32 %v392, %v1113
        %v1227 = vadd.f32 %v393, %v1117
        %v1228 = vadd.f32 %v394, %v1119
        %v1229 = vadd.f32 %v395, %v1123
        %v1230 = vadd.f32 %v396, %v1125
        %v1231 = vadd.f32 %v397, %v1129
        %v1232 = vadd.f32 %v398, %v1131
        %v1233 = vadd.f32 %v399, %v1135
        %v1234 = vadd.f32 %v400, %v1137
        %v1235 = vadd.f32 %v401, %v1141
        %v1236 = vadd.f32 %v402, %v1143
        %v1237 = vadd.f32 %v403, %v1147
        %v1238 = vadd.f32 %v404, %v1149
        %v1239 = vadd.f32 %v405, %v1153
        %v1240 = vadd.f32 %v406, %v1155
        %v1241 = vadd.f32 %v407, %v1159
        %v1242 = vadd.f32 %v408, %v1161
        %v1243 = vadd.f32 %v409, %v1165
        %v1244 = vadd.f32 %v410, %v1167
        %v1245 = vadd.f32 %v411, %v1171
        %v1246 = vadd.f32 %v412, %v1173
        %v1247 = vadd.f32 %v413, %v1177
        %v1248 = vadd.f32 %v414, %v1179
        %v1249 = vadd.f32 %v415, %v1183
        %v1250 = vadd.f32 %v416, %v1185
        %1251 = vst [vmem:[#allocation2] sm:$0xff] %v1187
        %1252 = vst [vmem:[#allocation2 + $0x8] sm:$0xff] %v1188
        %1253 = vst [vmem:[#allocation2 + $0x10] sm:$0xff] %v1189
        %1254 = vst [vmem:[#allocation2 + $0x18] sm:$0xff] %v1190
        %1255 = vst [vmem:[#allocation2 + $0x20] sm:$0xff] %v1191
        %1256 = vst [vmem:[#allocation2 + $0x28] sm:$0xff] %v1192
        %1257 = vst [vmem:[#allocation2 + $0x30] sm:$0xff] %v1193
        %1258 = vst [vmem:[#allocation2 + $0x38] sm:$0xff] %v1194
        %1259 = vst [vmem:[#allocation2 + $0x40] sm:$0xff] %v1195
        %1260 = vst [vmem:[#allocation2 + $0x48] sm:$0xff] %v1196
        %1261 = vst [vmem:[#allocation2 + $0x50] sm:$0xff] %v1197
        %1262 = vst [vmem:[#allocation2 + $0x58] sm:$0xff] %v1198
        %1263 = vst [vmem:[#allocation2 + $0x60] sm:$0xff] %v1199
        %1264 = vst [vmem:[#allocation2 + $0x68] sm:$0xff] %v1200
        %1265 = vst [vmem:[#allocation2 + $0x70] sm:$0xff] %v1201
        %1266 = vst [vmem:[#allocation2 + $0x78] sm:$0xff] %v1202
        %1267 = vst [vmem:[#allocation2 + $0x80] sm:$0xff] %v1203
        %1268 = vst [vmem:[#allocation2 + $0x88] sm:$0xff] %v1204
        %1269 = vst [vmem:[#allocation2 + $0x90] sm:$0xff] %v1205
        %1270 = vst [vmem:[#allocation2 + $0x98] sm:$0xff] %v1206
        %1271 = vst [vmem:[#allocation2 + $0xa0] sm:$0xff] %v1207
        %1272 = vst [vmem:[#allocation2 + $0xa8] sm:$0xff] %v1208
        %1273 = vst [vmem:[#allocation2 + $0xb0] sm:$0xff] %v1209
        %1274 = vst [vmem:[#allocation2 + $0xb8] sm:$0xff] %v1210
        %1275 = vst [vmem:[#allocation2 + $0xc0] sm:$0xff] %v1211
        %1276 = vst [vmem:[#allocation2 + $0xc8] sm:$0xff] %v1212
        %1277 = vst [vmem:[#allocation2 + $0xd0] sm:$0xff] %v1213
        %1278 = vst [vmem:[#allocation2 + $0xd8] sm:$0xff] %v1214
        %1279 = vst [vmem:[#allocation2 + $0xe0] sm:$0xff] %v1215
        %1280 = vst [vmem:[#allocation2 + $0xe8] sm:$0xff] %v1216
        %1281 = vst [vmem:[#allocation2 + $0xf0] sm:$0xff] %v1217
        %1282 = vst [vmem:[#allocation2 + $0xf8] sm:$0xff] %v1218
        %1283 = vst [vmem:[#allocation2 + $0x100] sm:$0xff] %v1219
        %1284 = vst [vmem:[#allocation2 + $0x108] sm:$0xff] %v1220
        %1285 = vst [vmem:[#allocation2 + $0x110] sm:$0xff] %v1221
        %1286 = vst [vmem:[#allocation2 + $0x118] sm:$0xff] %v1222
        %1287 = vst [vmem:[#allocation2 + $0x120] sm:$0xff] %v1223
        %1288 = vst [vmem:[#allocation2 + $0x128] sm:$0xff] %v1224
        %1289 = vst [vmem:[#allocation2 + $0x130] sm:$0xff] %v1225
        %1290 = vst [vmem:[#allocation2 + $0x138] sm:$0xff] %v1226
        %1291 = vst [vmem:[#allocation2 + $0x140] sm:$0xff] %v1227
        %1292 = vst [vmem:[#allocation2 + $0x148] sm:$0xff] %v1228
        %1293 = vst [vmem:[#allocation2 + $0x150] sm:$0xff] %v1229
        %1294 = vst [vmem:[#allocation2 + $0x158] sm:$0xff] %v1230
        %1295 = vst [vmem:[#allocation2 + $0x160] sm:$0xff] %v1231
        %1296 = vst [vmem:[#allocation2 + $0x168] sm:$0xff] %v1232
        %1297 = vst [vmem:[#allocation2 + $0x170] sm:$0xff] %v1233
        %1298 = vst [vmem:[#allocation2 + $0x178] sm:$0xff] %v1234
        %1299 = vst [vmem:[#allocation2 + $0x180] sm:$0xff] %v1235
        %1300 = vst [vmem:[#allocation2 + $0x188] sm:$0xff] %v1236
        %1301 = vst [vmem:[#allocation2 + $0x190] sm:$0xff] %v1237
        %1302 = vst [vmem:[#allocation2 + $0x198] sm:$0xff] %v1238
        %1303 = vst [vmem:[#allocation2 + $0x1a0] sm:$0xff] %v1239
        %1304 = vst [vmem:[#allocation2 + $0x1a8] sm:$0xff] %v1240
        %1305 = vst [vmem:[#allocation2 + $0x1b0] sm:$0xff] %v1241
        %1306 = vst [vmem:[#allocation2 + $0x1b8] sm:$0xff] %v1242
        %1307 = vst [vmem:[#allocation2 + $0x1c0] sm:$0xff] %v1243
        %1308 = vst [vmem:[#allocation2 + $0x1c8] sm:$0xff] %v1244
        %1309 = vst [vmem:[#allocation2 + $0x1d0] sm:$0xff] %v1245
        %1310 = vst [vmem:[#allocation2 + $0x1d8] sm:$0xff] %v1246
        %1311 = vst [vmem:[#allocation2 + $0x1e0] sm:$0xff] %v1247
        %1312 = vst [vmem:[#allocation2 + $0x1e8] sm:$0xff] %v1248
        %1313 = vst [vmem:[#allocation2 + $0x1f0] sm:$0xff] %v1249
        %1314 = vst [vmem:[#allocation2 + $0x1f8] sm:$0xff] %v1250
        // Predicated region
        $region49: #{tpu_custom_call.1} parent=31 // pred_check
          %p1315 = pneg %p285
        $region50: #{tpu_custom_call.1} parent=31 // pred_check_branch
          %1317 = sbr.rel (%p1315) target = $region52
        $region51: #{tpu_custom_call.1} parent=31 // pred_region
          %v1318 = vld [vmem:[#allocation2] sm:$0xff]
          %v1319 = vld [vmem:[#allocation2 + $0x8] sm:$0xff]
          %v1320 = vld [vmem:[#allocation2 + $0x10] sm:$0xff]
          %v1321 = vld [vmem:[#allocation2 + $0x18] sm:$0xff]
          %v1322 = vld [vmem:[#allocation2 + $0x20] sm:$0xff]
          %v1323 = vld [vmem:[#allocation2 + $0x28] sm:$0xff]
          %v1324 = vld [vmem:[#allocation2 + $0x30] sm:$0xff]
          %v1325 = vld [vmem:[#allocation2 + $0x38] sm:$0xff]
          %v1326 = vld [vmem:[#allocation2 + $0x40] sm:$0xff]
          %v1327 = vld [vmem:[#allocation2 + $0x48] sm:$0xff]
          %v1328 = vld [vmem:[#allocation2 + $0x50] sm:$0xff]
          %v1329 = vld [vmem:[#allocation2 + $0x58] sm:$0xff]
          %v1330 = vld [vmem:[#allocation2 + $0x60] sm:$0xff]
          %v1331 = vld [vmem:[#allocation2 + $0x68] sm:$0xff]
          %v1332 = vld [vmem:[#allocation2 + $0x70] sm:$0xff]
          %v1333 = vld [vmem:[#allocation2 + $0x78] sm:$0xff]
          %v1334 = vld [vmem:[#allocation2 + $0x80] sm:$0xff]
          %v1335 = vld [vmem:[#allocation2 + $0x88] sm:$0xff]
          %v1336 = vld [vmem:[#allocation2 + $0x90] sm:$0xff]
          %v1337 = vld [vmem:[#allocation2 + $0x98] sm:$0xff]
          %v1338 = vld [vmem:[#allocation2 + $0xa0] sm:$0xff]
          %v1339 = vld [vmem:[#allocation2 + $0xa8] sm:$0xff]
          %v1340 = vld [vmem:[#allocation2 + $0xb0] sm:$0xff]
          %v1341 = vld [vmem:[#allocation2 + $0xb8] sm:$0xff]
          %v1342 = vld [vmem:[#allocation2 + $0xc0] sm:$0xff]
          %v1343 = vld [vmem:[#allocation2 + $0xc8] sm:$0xff]
          %v1344 = vld [vmem:[#allocation2 + $0xd0] sm:$0xff]
          %v1345 = vld [vmem:[#allocation2 + $0xd8] sm:$0xff]
          %v1346 = vld [vmem:[#allocation2 + $0xe0] sm:$0xff]
          %v1347 = vld [vmem:[#allocation2 + $0xe8] sm:$0xff]
          %v1348 = vld [vmem:[#allocation2 + $0xf0] sm:$0xff]
          %v1349 = vld [vmem:[#allocation2 + $0xf8] sm:$0xff]
          %v1350 = vld [vmem:[#allocation2 + $0x100] sm:$0xff]
          %v1351 = vld [vmem:[#allocation2 + $0x108] sm:$0xff]
          %v1352 = vld [vmem:[#allocation2 + $0x110] sm:$0xff]
          %v1353 = vld [vmem:[#allocation2 + $0x118] sm:$0xff]
          %v1354 = vld [vmem:[#allocation2 + $0x120] sm:$0xff]
          %v1355 = vld [vmem:[#allocation2 + $0x128] sm:$0xff]
          %v1356 = vld [vmem:[#allocation2 + $0x130] sm:$0xff]
          %v1357 = vld [vmem:[#allocation2 + $0x138] sm:$0xff]
          %v1358 = vld [vmem:[#allocation2 + $0x140] sm:$0xff]
          %v1359 = vld [vmem:[#allocation2 + $0x148] sm:$0xff]
          %v1360 = vld [vmem:[#allocation2 + $0x150] sm:$0xff]
          %v1361 = vld [vmem:[#allocation2 + $0x158] sm:$0xff]
          %v1362 = vld [vmem:[#allocation2 + $0x160] sm:$0xff]
          %v1363 = vld [vmem:[#allocation2 + $0x168] sm:$0xff]
          %v1364 = vld [vmem:[#allocation2 + $0x170] sm:$0xff]
          %v1365 = vld [vmem:[#allocation2 + $0x178] sm:$0xff]
          %v1366 = vld [vmem:[#allocation2 + $0x180] sm:$0xff]
          %v1367 = vld [vmem:[#allocation2 + $0x188] sm:$0xff]
          %v1368 = vld [vmem:[#allocation2 + $0x190] sm:$0xff]
          %v1369 = vld [vmem:[#allocation2 + $0x198] sm:$0xff]
          %v1370 = vld [vmem:[#allocation2 + $0x1a0] sm:$0xff]
          %v1371 = vld [vmem:[#allocation2 + $0x1a8] sm:$0xff]
          %v1372 = vld [vmem:[#allocation2 + $0x1b0] sm:$0xff]
          %v1373 = vld [vmem:[#allocation2 + $0x1b8] sm:$0xff]
          %v1374 = vld [vmem:[#allocation2 + $0x1c0] sm:$0xff]
          %v1375 = vld [vmem:[#allocation2 + $0x1c8] sm:$0xff]
          %v1376 = vld [vmem:[#allocation2 + $0x1d0] sm:$0xff]
          %v1377 = vld [vmem:[#allocation2 + $0x1d8] sm:$0xff]
          %v1378 = vld [vmem:[#allocation2 + $0x1e0] sm:$0xff]
          %v1379 = vld [vmem:[#allocation2 + $0x1e8] sm:$0xff]
          %v1380 = vld [vmem:[#allocation2 + $0x1f0] sm:$0xff]
          %v1381 = vld [vmem:[#allocation2 + $0x1f8] sm:$0xff]
          %v1382 = vld [vmem:[%s250] sm:$0x3]
          %v1384 = vlaneseq
          %v1385 = vshrl.u32 %v1384, 7
          %v1386 = vsub.s32 0, %v1385
          %v1387 = vrot.slane %v1382, %v1386
          %v1388 = vlaneseq
          %v1389 = vshrl.u32 %v1388, 7
          %v1390 = vsub.s32 1, %v1389
          %v1391 = vrot.slane %v1382, %v1390
          %v1394 = vadd.f32 %v1318, %v1387
          %v1395 = vadd.f32 %v1319, %v1391
          %v1396 = vadd.f32 %v1320, %v1387
          %v1397 = vadd.f32 %v1321, %v1391
          %v1398 = vadd.f32 %v1322, %v1387
          %v1399 = vadd.f32 %v1323, %v1391
          %v1400 = vadd.f32 %v1324, %v1387
          %v1401 = vadd.f32 %v1325, %v1391
          %v1402 = vadd.f32 %v1326, %v1387
          %v1403 = vadd.f32 %v1327, %v1391
          %v1404 = vadd.f32 %v1328, %v1387
          %v1405 = vadd.f32 %v1329, %v1391
          %v1406 = vadd.f32 %v1330, %v1387
          %v1407 = vadd.f32 %v1331, %v1391
          %v1408 = vadd.f32 %v1332, %v1387
          %v1409 = vadd.f32 %v1333, %v1391
          %v1410 = vadd.f32 %v1334, %v1387
          %v1411 = vadd.f32 %v1335, %v1391
          %v1412 = vadd.f32 %v1336, %v1387
          %v1413 = vadd.f32 %v1337, %v1391
          %v1414 = vadd.f32 %v1338, %v1387
          %v1415 = vadd.f32 %v1339, %v1391
          %v1416 = vadd.f32 %v1340, %v1387
          %v1417 = vadd.f32 %v1341, %v1391
          %v1418 = vadd.f32 %v1342, %v1387
          %v1419 = vadd.f32 %v1343, %v1391
          %v1420 = vadd.f32 %v1344, %v1387
          %v1421 = vadd.f32 %v1345, %v1391
          %v1422 = vadd.f32 %v1346, %v1387
          %v1423 = vadd.f32 %v1347, %v1391
          %v1424 = vadd.f32 %v1348, %v1387
          %v1425 = vadd.f32 %v1349, %v1391
          %v1426 = vadd.f32 %v1350, %v1387
          %v1427 = vadd.f32 %v1351, %v1391
          %v1428 = vadd.f32 %v1352, %v1387
          %v1429 = vadd.f32 %v1353, %v1391
          %v1430 = vadd.f32 %v1354, %v1387
          %v1431 = vadd.f32 %v1355, %v1391
          %v1432 = vadd.f32 %v1356, %v1387
          %v1433 = vadd.f32 %v1357, %v1391
          %v1434 = vadd.f32 %v1358, %v1387
          %v1435 = vadd.f32 %v1359, %v1391
          %v1436 = vadd.f32 %v1360, %v1387
          %v1437 = vadd.f32 %v1361, %v1391
          %v1438 = vadd.f32 %v1362, %v1387
          %v1439 = vadd.f32 %v1363, %v1391
          %v1440 = vadd.f32 %v1364, %v1387
          %v1441 = vadd.f32 %v1365, %v1391
          %v1442 = vadd.f32 %v1366, %v1387
          %v1443 = vadd.f32 %v1367, %v1391
          %v1444 = vadd.f32 %v1368, %v1387
          %v1445 = vadd.f32 %v1369, %v1391
          %v1446 = vadd.f32 %v1370, %v1387
          %v1447 = vadd.f32 %v1371, %v1391
          %v1448 = vadd.f32 %v1372, %v1387
          %v1449 = vadd.f32 %v1373, %v1391
          %v1450 = vadd.f32 %v1374, %v1387
          %v1451 = vadd.f32 %v1375, %v1391
          %v1452 = vadd.f32 %v1376, %v1387
          %v1453 = vadd.f32 %v1377, %v1391
          %v1454 = vadd.f32 %v1378, %v1387
          %v1455 = vadd.f32 %v1379, %v1391
          %v1456 = vadd.f32 %v1380, %v1387
          %v1457 = vadd.f32 %v1381, %v1391
          %1458 = vst [vmem:[%s277] sm:$0xff] %v1394
          %1459 = vst [vmem:[%s277 + $0x8] sm:$0xff] %v1395
          %1460 = vst [vmem:[%s277 + $0x10] sm:$0xff] %v1396
          %1461 = vst [vmem:[%s277 + $0x18] sm:$0xff] %v1397
          %1462 = vst [vmem:[%s277 + $0x20] sm:$0xff] %v1398
          %1463 = vst [vmem:[%s277 + $0x28] sm:$0xff] %v1399
          %1464 = vst [vmem:[%s277 + $0x30] sm:$0xff] %v1400
          %1465 = vst [vmem:[%s277 + $0x38] sm:$0xff] %v1401
          %1466 = vst [vmem:[%s277 + $0x40] sm:$0xff] %v1402
          %1467 = vst [vmem:[%s277 + $0x48] sm:$0xff] %v1403
          %1468 = vst [vmem:[%s277 + $0x50] sm:$0xff] %v1404
          %1469 = vst [vmem:[%s277 + $0x58] sm:$0xff] %v1405
          %1470 = vst [vmem:[%s277 + $0x60] sm:$0xff] %v1406
          %1471 = vst [vmem:[%s277 + $0x68] sm:$0xff] %v1407
          %1472 = vst [vmem:[%s277 + $0x70] sm:$0xff] %v1408
          %1473 = vst [vmem:[%s277 + $0x78] sm:$0xff] %v1409
          %1474 = vst [vmem:[%s277 + $0x80] sm:$0xff] %v1410
          %1475 = vst [vmem:[%s277 + $0x88] sm:$0xff] %v1411
          %1476 = vst [vmem:[%s277 + $0x90] sm:$0xff] %v1412
          %1477 = vst [vmem:[%s277 + $0x98] sm:$0xff] %v1413
          %1478 = vst [vmem:[%s277 + $0xa0] sm:$0xff] %v1414
          %1479 = vst [vmem:[%s277 + $0xa8] sm:$0xff] %v1415
          %1480 = vst [vmem:[%s277 + $0xb0] sm:$0xff] %v1416
          %1481 = vst [vmem:[%s277 + $0xb8] sm:$0xff] %v1417
          %1482 = vst [vmem:[%s277 + $0xc0] sm:$0xff] %v1418
          %1483 = vst [vmem:[%s277 + $0xc8] sm:$0xff] %v1419
          %1484 = vst [vmem:[%s277 + $0xd0] sm:$0xff] %v1420
          %1485 = vst [vmem:[%s277 + $0xd8] sm:$0xff] %v1421
          %1486 = vst [vmem:[%s277 + $0xe0] sm:$0xff] %v1422
          %1487 = vst [vmem:[%s277 + $0xe8] sm:$0xff] %v1423
          %1488 = vst [vmem:[%s277 + $0xf0] sm:$0xff] %v1424
          %1489 = vst [vmem:[%s277 + $0xf8] sm:$0xff] %v1425
          %1490 = vst [vmem:[%s277 + $0x100] sm:$0xff] %v1426
          %1491 = vst [vmem:[%s277 + $0x108] sm:$0xff] %v1427
          %1492 = vst [vmem:[%s277 + $0x110] sm:$0xff] %v1428
          %1493 = vst [vmem:[%s277 + $0x118] sm:$0xff] %v1429
          %1494 = vst [vmem:[%s277 + $0x120] sm:$0xff] %v1430
          %1495 = vst [vmem:[%s277 + $0x128] sm:$0xff] %v1431
          %1496 = vst [vmem:[%s277 + $0x130] sm:$0xff] %v1432
          %1497 = vst [vmem:[%s277 + $0x138] sm:$0xff] %v1433
          %1498 = vst [vmem:[%s277 + $0x140] sm:$0xff] %v1434
          %1499 = vst [vmem:[%s277 + $0x148] sm:$0xff] %v1435
          %1500 = vst [vmem:[%s277 + $0x150] sm:$0xff] %v1436
          %1501 = vst [vmem:[%s277 + $0x158] sm:$0xff] %v1437
          %1502 = vst [vmem:[%s277 + $0x160] sm:$0xff] %v1438
          %1503 = vst [vmem:[%s277 + $0x168] sm:$0xff] %v1439
          %1504 = vst [vmem:[%s277 + $0x170] sm:$0xff] %v1440
          %1505 = vst [vmem:[%s277 + $0x178] sm:$0xff] %v1441
          %1506 = vst [vmem:[%s277 + $0x180] sm:$0xff] %v1442
          %1507 = vst [vmem:[%s277 + $0x188] sm:$0xff] %v1443
          %1508 = vst [vmem:[%s277 + $0x190] sm:$0xff] %v1444
          %1509 = vst [vmem:[%s277 + $0x198] sm:$0xff] %v1445
          %1510 = vst [vmem:[%s277 + $0x1a0] sm:$0xff] %v1446
          %1511 = vst [vmem:[%s277 + $0x1a8] sm:$0xff] %v1447
          %1512 = vst [vmem:[%s277 + $0x1b0] sm:$0xff] %v1448
          %1513 = vst [vmem:[%s277 + $0x1b8] sm:$0xff] %v1449
          %1514 = vst [vmem:[%s277 + $0x1c0] sm:$0xff] %v1450
          %1515 = vst [vmem:[%s277 + $0x1c8] sm:$0xff] %v1451
          %1516 = vst [vmem:[%s277 + $0x1d0] sm:$0xff] %v1452
          %1517 = vst [vmem:[%s277 + $0x1d8] sm:$0xff] %v1453
          %1518 = vst [vmem:[%s277 + $0x1e0] sm:$0xff] %v1454
          %1519 = vst [vmem:[%s277 + $0x1e8] sm:$0xff] %v1455
          %1520 = vst [vmem:[%s277 + $0x1f0] sm:$0xff] %v1456
          %1521 = vst [vmem:[%s277 + $0x1f8] sm:$0xff] %v1457
        $region52: #{tpu_custom_call.1} parent=31 // pred_fallthru
          _
        %s1522 = sand.u32 %s132, 1
        %s1523 = scalar_lea.sflag [#allocation5], %s1522
        %s1524 = sand.u32 %s132, 1
        %s1525 = smul.addr %s1524, 512
        %s1526 = scalar_lea.vmem [#allocation9], %s1525
        // Predicated region
        $region53: #{tpu_custom_call.1} parent=31 // pred_check
          %p1527 = pneg %p142
        $region54: #{tpu_custom_call.1} parent=31 // pred_check_branch
          %1529 = sbr.rel (%p1527) target = $region56
        $region55: #{tpu_custom_call.1} parent=31 // pred_region
          %s1530 = smul.u32 32, %s26
          %s1531 = smul.u32 2, %s27
          %s1533 = ssub.s32 8192, 8192
          %1534 = vsyncadd %s1523, %s1533
          %s1535 = smul.addr %s1530, 8
          %s1536 = sadd.s32 %s1531, %s1535
          %s1537 = smul.addr %s1536, 128
          %s1538 = scalar_lea.hbm %s3, %s1537
          %s1539 = sshll.u32 %s1526, 4
          %s1540 = int_to_ptr.vmem [resolvable:$true] %s1539
          %1545 = dma.vmem_to_hbm [thread:$0]  %s1540, 8192, %s1538, %s1523, 256, 1024, 16
        $region56: #{tpu_custom_call.1} parent=31 // pred_fallthru
          _
      $region32: #{tpu_custom_call.1} parent=5 // pred_fallthru
        _
      %p1546 = scmp.le.s32.totalorder 2, %s16
      // Predicated region
      $region57: #{tpu_custom_call.1} parent=5 // pred_check
        %p1547 = pneg %p1546
      $region58: #{tpu_custom_call.1} parent=5 // pred_check_branch
        %1549 = sbr.rel (%p1547) target = $region60
      $region59: #{tpu_custom_call.1} parent=5 // pred_region
        %s1550 = ssub.s32 %s16, 2
        // Predicated region
        $region61: #{tpu_custom_call.1} parent=59 // pred_check
          %p1551 = pneg %p148
        $region62: #{tpu_custom_call.1} parent=59 // pred_check_branch
          %1553 = sbr.rel (%p1551) target = $region64
        $region63: #{tpu_custom_call.1} parent=59 // pred_region
          %s1554 = sand.u32 %s133, 1
          %s1555 = scalar_lea.sflag [#allocation5], %s1554
          %s1556 = sand.u32 %s133, 1
          %s1557 = smul.addr %s1556, 512
          %s1558 = scalar_lea.vmem [#allocation9], %s1557
          %1559 = dma.done %s1555, 8192
        $region64: #{tpu_custom_call.1} parent=59 // pred_fallthru
          _
      $region60: #{tpu_custom_call.1} parent=5 // pred_fallthru
        _
    $region6: #{tpu_custom_call.1} parent=1 // loop_footer
      %s20 = sadd.s32 1, %s16
    $region7: #{tpu_custom_call.1} parent=1 // loop_footer_branch
      %15 = sbr.rel target = $region3
    $region8: #{tpu_custom_call.1} parent=1 // loop_exit
      _
    %1560 = vsyncpa [#allocation4], 1
    %s1561 = scalar_lea.sflag [#allocation4], 1
    %1562 = vsyncpa %s1561, 1
    %1563 = vsyncpa [#allocation7], 1
    %s1564 = scalar_lea.sflag [#allocation7], 1
    %1565 = vsyncpa %s1564, 1
    %1566 = vsyncpa [#allocation5], 1
    %s1567 = scalar_lea.sflag [#allocation5], 1
    %1568 = vsyncpa %s1567, 1

</llo_original>
